<compile_context>
chip_gen: v7x
topology: tpu7x:2x2x1
jax: 0.10.0
libtpu: 0.0.40
codegen_flags: <defaults>
</compile_context>

<pallas_src>
import functools

import jax
import jax.numpy as jnp
import numpy as np
from jax.experimental import pallas as pl
from jax.experimental.pallas import tpu as pltpu

_EPS = 1e-5


def _round_up(n, m):
    return ((n + m - 1) // m) * m


def _pick_batch_tile(B, T, target_m=512):
    """Largest divisor of B keeping Bt*T (the MXU M dimension) near target_m."""
    best = 1
    for d in range(1, B + 1):
        if B % d == 0 and d * T <= max(target_m, T):
            best = d
    return best


# ------------------------------ Pallas kernel -------------------------------

def _resblock_kernel(*refs, K, T, Bt, has_proj):
    """Fused ResidualBlock1D forward for one group of Bt batch elements.

    refs = (x, w1, s1, b1, w2, s2, b2, [ws, ss, bs], out, xp_scratch, o1p_scratch)
      x:   (Bt, T, Cin_p)        bf16, channels-last, channel-padded (zeros)
      w1:  (K, Cin_p, Cmid_p)    bf16 conv1 weight taps
      w2:  (K, Cmid_p, Cout_p)   bf16 conv2 weight taps
      ws:  (Cin_p, Cout_p)       bf16 1x1 shortcut weight (only if has_proj)
      s*/b*: (1, C*_p)           f32 folded BatchNorm scale / shift
      out: (Bt, T, Cout_p)       bf16
      xp_scratch:  (Bt, T+K-1, Cin_p)  bf16 VMEM halo slab for conv1
      o1p_scratch: (Bt, T+K-1, Cmid_p) bf16 VMEM halo slab for conv2
    """
    if has_proj:
        (x_ref, w1_ref, s1_ref, b1_ref, w2_ref, s2_ref, b2_ref,
         ws_ref, ss_ref, bs_ref, out_ref, xp_ref, o1p_ref) = refs
    else:
        (x_ref, w1_ref, s1_ref, b1_ref, w2_ref, s2_ref, b2_ref,
         out_ref, xp_ref, o1p_ref) = refs

    pad = K // 2
    M = Bt * T          # MXU M dimension: all folded batch rows at once.

    def conv_bn(slab_ref, w_ref, s_ref, b_ref):
        # K accumulating MXU dots off the halo slab (no im2col concatenate).
        acc = None
        for k in range(K):
            lhs = slab_ref[:, k:k + T, :].reshape(M, slab_ref.shape[-1])
            d = jnp.dot(lhs, w_ref[k], preferred_element_type=jnp.float32)
            acc = d if acc is None else acc + d
        return acc * s_ref[...] + b_ref[...]

    # Halo staging for conv1: only the 2*pad halo rows per element are zeroed
    # (channel-pad lanes are already zero in the input, padded wrapper-side).
    if pad:
        z_in = jnp.zeros((Bt, pad, xp_ref.shape[-1]), xp_ref.dtype)
        xp_ref[:, :pad, :] = z_in
        xp_ref[:, pad + T:, :] = z_in
    xp_ref[:, pad:pad + T, :] = x_ref[...]

    # conv1 + bn1 + relu (Dropout is identity in inference mode).
    out1 = jnp.maximum(conv_bn(xp_ref, w1_ref, s1_ref, b1_ref), 0.0)
    # TODO(synk): training-mode dropout RNG / batch-statistic BatchNorm are
    # not modeled (module is evaluated in eval mode).

    # Stage conv1 output (bf16) with halo in VMEM — no HBM round trip.
    if pad:
        z_mid = jnp.zeros((Bt, pad, o1p_ref.shape[-1]), o1p_ref.dtype)
        o1p_ref[:, :pad, :] = z_mid
        o1p_ref[:, pad + T:, :] = z_mid
    o1p_ref[:, pad:pad + T, :] = out1.reshape(Bt, T, -1).astype(o1p_ref.dtype)

    # conv2 + bn2.
    out2 = conv_bn(o1p_ref, w2_ref, s2_ref, b2_ref)

    # Shortcut: 1x1 conv + BN, or identity.
    if has_proj:
        sc = (jnp.dot(x_ref[...].reshape(M, -1), ws_ref[...],
                      preferred_element_type=jnp.float32)
              * ss_ref[...] + bs_ref[...])
    else:
        sc = x_ref[...].reshape(M, -1).astype(jnp.float32)

    y = jnp.maximum(out2 + sc, 0.0)                  # f32 epilogue (v5e-safe)
    out_ref[...] = y.reshape(Bt, T, -1).astype(out_ref.dtype)


# --------------------------- parameter preparation --------------------------

def _bn_affine(bn):
    gamma, beta, mean, var = bn
    scale = gamma / jnp.sqrt(var + _EPS)
    shift = beta - mean * scale
    return scale, shift


def _pack_bn(bn, cout_p):
    scale, shift = _bn_affine(bn)
    c = scale.shape[0]
    scale = jnp.pad(scale, (0, cout_p - c)).reshape(1, cout_p).astype(jnp.float32)
    shift = jnp.pad(shift, (0, cout_p - c)).reshape(1, cout_p).astype(jnp.float32)
    return scale, shift


def _pack_conv_w(w_oik, cin_p, cout_p):
    # PyTorch (C_out, C_in, K) -> (K, Cin_p, Cout_p), bf16.
    c_out, c_in, k = w_oik.shape
    w = jnp.transpose(w_oik, (2, 1, 0))                        # (K, C_in, C_out)
    w = jnp.pad(w, ((0, 0), (0, cin_p - c_in), (0, cout_p - c_out)))
    return w.astype(jnp.bfloat16)


def _rand_bn(key, c):
    k1, k2, k3, k4 = jax.random.split(key, 4)
    gamma = jax.random.uniform(k1, (c,), jnp.float32, 0.5, 1.5)
    beta = 0.1 * jax.random.normal(k2, (c,), jnp.float32)
    mean = 0.1 * jax.random.normal(k3, (c,), jnp.float32)
    var = jax.random.uniform(k4, (c,), jnp.float32, 0.5, 1.5)
    return gamma, beta, mean, var


def init_block_params(key, in_channels, out_channels, kernel_size):
    ks = jax.random.split(key, 6)
    p = {
        "conv1_w": 0.1 * jax.random.normal(
            ks[0], (out_channels, in_channels, kernel_size), jnp.float32),
        "bn1": _rand_bn(ks[1], out_channels),
        "conv2_w": 0.1 * jax.random.normal(
            ks[2], (out_channels, out_channels, kernel_size), jnp.float32),
        "bn2": _rand_bn(ks[3], out_channels),
    }
    if in_channels != out_channels:
        # TODO(synk): only stride=1 (the module default) is implemented.
        p["sc_w"] = 0.1 * jax.random.normal(
            ks[4], (out_channels, in_channels, 1), jnp.float32)
        p["sc_bn"] = _rand_bn(ks[5], out_channels)
    return p


# --------------------------------- wrappers ----------------------------------

def residual_block_1d_nwc(x_btc, params, *, kernel_size):
    """Fused block on channels-last activations.

    x_btc: (B, T, Cin_p) bf16, channels padded to a multiple of 128 with zeros.
    Returns (B, T, Cout_p) bf16 (pad lanes are guaranteed zero, so blocks chain).
    BatchNorm uses folded running stats (inference); Dropout is identity.
    """
    B, T, Cin_p = x_btc.shape
    K = kernel_size
    assert K % 2 == 1, "only odd kernel_size ('same' padding) is supported"
    assert Cin_p % 128 == 0
    C_out = params["conv1_w"].shape[0]
    Cout_p = _round_up(C_out, 128)
    # TODO(synk): v6e/v7x MXU is 256 lanes wide in N; for real channel counts
    # size Cout_p (or fuse neighbouring blocks' weight columns) toward 256.

    has_proj = "sc_w" in params
    if not has_proj:
        assert Cin_p == Cout_p, "identity shortcut requires C_in == C_out"

    Bt = _pick_batch_tile(B, T)        # fold batches so MXU M = Bt*T is large
    grid = (B // Bt,)

    w1 = _pack_conv_w(params["conv1_w"], Cin_p, Cout_p)
    s1, b1 = _pack_bn(params["bn1"], Cout_p)
    w2 = _pack_conv_w(params["conv2_w"], Cout_p, Cout_p)
    s2, b2 = _pack_bn(params["bn2"], Cout_p)

    args = [x_btc, w1, s1, b1, w2, s2, b2]
    in_specs = [
        pl.BlockSpec((Bt, T, Cin_p), lambda g: (g, 0, 0)),
        pl.BlockSpec((K, Cin_p, Cout_p), lambda g: (0, 0, 0)),
        pl.BlockSpec((1, Cout_p), lambda g: (0, 0)),
        pl.BlockSpec((1, Cout_p), lambda g: (0, 0)),
        pl.BlockSpec((K, Cout_p, Cout_p), lambda g: (0, 0, 0)),
        pl.BlockSpec((1, Cout_p), lambda g: (0, 0)),
        pl.BlockSpec((1, Cout_p), lambda g: (0, 0)),
    ]
    flops = 2 * B * T * K * Cin_p * Cout_p + 2 * B * T * K * Cout_p * Cout_p
    bytes_accessed = (x_btc.size * 2 + B * T * Cout_p * 2
                      + (w1.size + w2.size) * 2
                      + (s1.size + b1.size + s2.size + b2.size) * 4)

    if has_proj:
        ws = _pack_conv_w(params["sc_w"], Cin_p, Cout_p)[0]     # (Cin_p, Cout_p)
        ss, bs = _pack_bn(params["sc_bn"], Cout_p)
        args += [ws, ss, bs]
        in_specs += [
            pl.BlockSpec((Cin_p, Cout_p), lambda g: (0, 0)),
            pl.BlockSpec((1, Cout_p), lambda g: (0, 0)),
            pl.BlockSpec((1, Cout_p), lambda g: (0, 0)),
        ]
        flops += 2 * B * T * Cin_p * Cout_p
        bytes_accessed += ws.size * 2 + (ss.size + bs.size) * 4

    kernel = functools.partial(_resblock_kernel, K=K, T=T, Bt=Bt,
                               has_proj=has_proj)

    return pl.pallas_call(
        kernel,
        out_shape=jax.ShapeDtypeStruct((B, T, Cout_p), jnp.bfloat16),
        grid=grid,
        in_specs=in_specs,
        out_specs=pl.BlockSpec((Bt, T, Cout_p), lambda g: (g, 0, 0)),
        scratch_shapes=[
            pltpu.VMEM((Bt, T + K - 1, Cin_p), jnp.bfloat16),   # halo-padded x
            pltpu.VMEM((Bt, T + K - 1, Cout_p), jnp.bfloat16),  # halo conv1 out
        ],
        compiler_params=pltpu.CompilerParams(
            dimension_semantics=("parallel",)),
        cost_estimate=pl.CostEstimate(
            flops=int(flops), transcendentals=0,
            bytes_accessed=int(bytes_accessed)),
    )(*args)


def to_nwc_padded(x_ncw):
    """PyTorch NCW f32 -> channels-last bf16, channel-padded to 128 lanes."""
    B, C, T = x_ncw.shape
    cin_p = _round_up(C, 128)
    x = jnp.transpose(x_ncw, (0, 2, 1)).astype(jnp.bfloat16)
    return jnp.pad(x, ((0, 0), (0, 0), (0, cin_p - C)))


def from_nwc_padded(y_btc, c_out):
    """Channels-last padded bf16 -> PyTorch NCW f32 (model boundary only)."""
    return jnp.transpose(y_btc[:, :, :c_out].astype(jnp.float32), (0, 2, 1))


def residual_block_1d(x_ncw, params, *, kernel_size):
    """Single-block convenience wrapper taking/returning PyTorch NCW layout.

    For stacked blocks call residual_block_1d_nwc directly so activations stay
    channels-last bf16 between blocks (one HBM round trip per block)."""
    C_out = params["conv1_w"].shape[0]
    y = residual_block_1d_nwc(to_nwc_padded(x_ncw), params,
                              kernel_size=kernel_size)
    return from_nwc_padded(y, C_out)


# --------------------- pure-JAX reference (for the check) -------------------

def _bf16(v):
    return v.astype(jnp.bfloat16).astype(jnp.float32)


def _ref_conv(x, w_oik):
    k = w_oik.shape[-1]
    w = jnp.transpose(w_oik, (2, 1, 0))                        # (K, C_in, C_out)
    return jax.lax.conv_general_dilated(
        x, w, window_strides=(1,), padding=[(k // 2, k // 2)],
        dimension_numbers=("NWC", "WIO", "NWC"),
        precision=jax.lax.Precision.HIGHEST)


def residual_block_1d_ref(x_ncw, params):
    """Reference with the same bf16 operand/staging/output rounding as the kernel."""
    x = _bf16(jnp.transpose(x_ncw, (0, 2, 1)))
    s1, b1 = _bn_affine(params["bn1"])
    out1 = jnp.maximum(_ref_conv(x, _bf16(params["conv1_w"])) * s1 + b1, 0.0)
    out1 = _bf16(out1)                       # kernel stages conv1 output as bf16
    s2, b2 = _bn_affine(params["bn2"])
    out2 = _ref_conv(out1, _bf16(params["conv2_w"])) * s2 + b2
    if "sc_w" in params:
        ss, bs = _bn_affine(params["sc_bn"])
        sc = _ref_conv(x, _bf16(params["sc_w"])) * ss + bs
    else:
        sc = x
    y = _bf16(jnp.maximum(out2 + sc, 0.0))   # kernel output is bf16
    return jnp.transpose(y, (0, 2, 1))


if __name__ == "__main__":
    key = jax.random.PRNGKey(0)
    kp1, kp2, kx = jax.random.split(key, 3)

    B, T = 2, 16
    in_channels, out_channels, kernel_size = 24, 48, 3

    # Block A exercises the 1x1-conv+BN projection shortcut (C_in != C_out);
    # block B exercises the identity shortcut (C_in == C_out).
    params_proj = init_block_params(kp1, in_channels, out_channels, kernel_size)
    params_id = init_block_params(kp2, out_channels, out_channels, kernel_size)

    x = jax.random.normal(kx, (B, in_channels, T), jnp.float32)

    # Chained blocks: activations stay channels-last bf16 (B, T, C_p) between
    # blocks; NCW <-> NWC conversion and channel slicing only at the boundary.
    x_nwc = to_nwc_padded(x)
    y1p = residual_block_1d_nwc(x_nwc, params_proj, kernel_size=kernel_size)
    y2p = residual_block_1d_nwc(y1p, params_id, kernel_size=kernel_size)
    y1 = from_nwc_padded(y1p, out_channels)
    y2 = from_nwc_padded(y2p, out_channels)
    jax.block_until_ready(y2)
    assert y1.shape == (B, out_channels, T), y1.shape
    assert y2.shape == (B, out_channels, T), y2.shape

    y1_ref = residual_block_1d_ref(x, params_proj)
    y2_ref = residual_block_1d_ref(y1, params_id)   # same input as the kernel saw
    np.testing.assert_allclose(np.asarray(y1), np.asarray(y1_ref),
                               rtol=2e-2, atol=2e-2)
    np.testing.assert_allclose(np.asarray(y2), np.asarray(y2_ref),
                               rtol=2e-2, atol=2e-2)
    print("KERNEL_OK")
</pallas_src>

<mosaic_0001>
module attributes {stable_mosaic.version = 11 : i64} {
  func.func @_resblock_kernel(%arg0: i32, %arg1: memref<2x16x128xbf16, #tpu.memory_space<vmem>>, %arg2: memref<3x128x128xbf16, #tpu.memory_space<vmem>>, %arg3: memref<1x128xf32, #tpu.memory_space<vmem>>, %arg4: memref<1x128xf32, #tpu.memory_space<vmem>>, %arg5: memref<3x128x128xbf16, #tpu.memory_space<vmem>>, %arg6: memref<1x128xf32, #tpu.memory_space<vmem>>, %arg7: memref<1x128xf32, #tpu.memory_space<vmem>>, %arg8: memref<128x128xbf16, #tpu.memory_space<vmem>>, %arg9: memref<1x128xf32, #tpu.memory_space<vmem>>, %arg10: memref<1x128xf32, #tpu.memory_space<vmem>>, %arg11: memref<2x16x128xbf16, #tpu.memory_space<vmem>>, %arg12: memref<2x18x128xbf16, #tpu.memory_space<vmem>>, %arg13: memref<2x18x128xbf16, #tpu.memory_space<vmem>>) attributes {dimension_semantics = [#tpu.dimension_semantics<parallel>], iteration_bounds = array<i64: 1>, scalar_prefetch = 0 : i64, scratch_operands = 2 : i64, tpu.core_type = #tpu.core_type<tc>, window_params = [{transform_indices = @transform_0, window_bounds = array<i64: 2, 16, 128>}, {pipeline_mode = #tpu.pipeline_mode<synchronous>, transform_indices = @transform_1, window_bounds = array<i64: 3, 128, 128>}, {pipeline_mode = #tpu.pipeline_mode<synchronous>, transform_indices = @transform_2, window_bounds = array<i64: 1, 128>}, {pipeline_mode = #tpu.pipeline_mode<synchronous>, transform_indices = @transform_3, window_bounds = array<i64: 1, 128>}, {pipeline_mode = #tpu.pipeline_mode<synchronous>, transform_indices = @transform_4, window_bounds = array<i64: 3, 128, 128>}, {pipeline_mode = #tpu.pipeline_mode<synchronous>, transform_indices = @transform_5, window_bounds = array<i64: 1, 128>}, {pipeline_mode = #tpu.pipeline_mode<synchronous>, transform_indices = @transform_6, window_bounds = array<i64: 1, 128>}, {pipeline_mode = #tpu.pipeline_mode<synchronous>, transform_indices = @transform_7, window_bounds = array<i64: 128, 128>}, {pipeline_mode = #tpu.pipeline_mode<synchronous>, transform_indices = @transform_8, window_bounds = array<i64: 1, 128>}, {pipeline_mode = #tpu.pipeline_mode<synchronous>, transform_indices = @transform_9, window_bounds = array<i64: 1, 128>}, {transform_indices = @transform_10, window_bounds = array<i64: 2, 16, 128>}]} {
    %cst = arith.constant 0.000000e+00 : bf16
    %0 = vector.broadcast %cst : bf16 to vector<2x1x128xbf16>
    %c0 = arith.constant 0 : index
    %c0_0 = arith.constant 0 : index
    %c0_1 = arith.constant 0 : index
    %1 = vector.load %arg12[%c0, %c0_0, %c0_1] : memref<2x18x128xbf16, #tpu.memory_space<vmem>>, vector<2x1x128xbf16>
    tpu.vector_store %arg12[%c0, %c0_0, %c0_1], %0 {strides = array<i32>} : memref<2x18x128xbf16, #tpu.memory_space<vmem>>, vector<2x1x128xbf16>,
    %c0_2 = arith.constant 0 : index
    %c17 = arith.constant 17 : index
    %c0_3 = arith.constant 0 : index
    %2 = vector.load %arg12[%c0_2, %c17, %c0_3] : memref<2x18x128xbf16, #tpu.memory_space<vmem>>, vector<2x1x128xbf16>
    tpu.vector_store %arg12[%c0_2, %c17, %c0_3], %0 {strides = array<i32>} : memref<2x18x128xbf16, #tpu.memory_space<vmem>>, vector<2x1x128xbf16>,
    %c0_4 = arith.constant 0 : index
    %c0_5 = arith.constant 0 : index
    %c0_6 = arith.constant 0 : index
    %3 = vector.load %arg1[%c0_4, %c0_5, %c0_6] : memref<2x16x128xbf16, #tpu.memory_space<vmem>>, vector<2x16x128xbf16>
    %c0_7 = arith.constant 0 : index
    %c1 = arith.constant 1 : index
    %c0_8 = arith.constant 0 : index
    %4 = vector.load %arg12[%c0_7, %c1, %c0_8] : memref<2x18x128xbf16, #tpu.memory_space<vmem>>, vector<2x16x128xbf16>
    tpu.vector_store %arg12[%c0_7, %c1, %c0_8], %3 {strides = array<i32>} : memref<2x18x128xbf16, #tpu.memory_space<vmem>>, vector<2x16x128xbf16>,
    %c0_9 = arith.constant 0 : index
    %c0_10 = arith.constant 0 : index
    %c0_11 = arith.constant 0 : index
    %5 = vector.load %arg12[%c0_9, %c0_10, %c0_11] : memref<2x18x128xbf16, #tpu.memory_space<vmem>>, vector<2x16x128xbf16>
    %6 = vector.shape_cast %5 : vector<2x16x128xbf16> to vector<32x128xbf16>
    %c0_12 = arith.constant 0 : index
    %c0_13 = arith.constant 0 : index
    %c0_14 = arith.constant 0 : index
    %7 = vector.load %arg2[%c0_12, %c0_13, %c0_14] : memref<3x128x128xbf16, #tpu.memory_space<vmem>>, vector<1x128x128xbf16>
    %8 = vector.shape_cast %7 : vector<1x128x128xbf16> to vector<128x128xbf16>
    %cst_15 = arith.constant dense<0.000000e+00> : vector<32x128xf32>
    %9 = tpu.matmul %6, %8, %cst_15 {dimension_numbers = #tpu.dot_dimension_numbers<[1], [0], [0], [1], [0, 0, 1, 1], [], []>} : vector<32x128xbf16>, vector<128x128xbf16>, vector<32x128xf32> -> vector<32x128xf32>
    %c0_16 = arith.constant 0 : index
    %c1_17 = arith.constant 1 : index
    %c0_18 = arith.constant 0 : index
    %10 = vector.load %arg12[%c0_16, %c1_17, %c0_18] : memref<2x18x128xbf16, #tpu.memory_space<vmem>>, vector<2x16x128xbf16>
    %11 = vector.shape_cast %10 : vector<2x16x128xbf16> to vector<32x128xbf16>
    %c1_19 = arith.constant 1 : index
    %c0_20 = arith.constant 0 : index
    %c0_21 = arith.constant 0 : index
    %12 = vector.load %arg2[%c1_19, %c0_20, %c0_21] : memref<3x128x128xbf16, #tpu.memory_space<vmem>>, vector<1x128x128xbf16>
    %13 = vector.shape_cast %12 : vector<1x128x128xbf16> to vector<128x128xbf16>
    %cst_22 = arith.constant dense<0.000000e+00> : vector<32x128xf32>
    %14 = tpu.matmul %11, %13, %cst_22 {dimension_numbers = #tpu.dot_dimension_numbers<[1], [0], [0], [1], [0, 0, 1, 1], [], []>} : vector<32x128xbf16>, vector<128x128xbf16>, vector<32x128xf32> -> vector<32x128xf32>
    %15 = arith.addf %9, %14 : vector<32x128xf32>
    %c0_23 = arith.constant 0 : index
    %c2 = arith.constant 2 : index
    %c0_24 = arith.constant 0 : index
    %16 = vector.load %arg12[%c0_23, %c2, %c0_24] : memref<2x18x128xbf16, #tpu.memory_space<vmem>>, vector<2x16x128xbf16>
    %17 = vector.shape_cast %16 : vector<2x16x128xbf16> to vector<32x128xbf16>
    %c2_25 = arith.constant 2 : index
    %c0_26 = arith.constant 0 : index
    %c0_27 = arith.constant 0 : index
    %18 = vector.load %arg2[%c2_25, %c0_26, %c0_27] : memref<3x128x128xbf16, #tpu.memory_space<vmem>>, vector<1x128x128xbf16>
    %19 = vector.shape_cast %18 : vector<1x128x128xbf16> to vector<128x128xbf16>
    %cst_28 = arith.constant dense<0.000000e+00> : vector<32x128xf32>
    %20 = tpu.matmul %17, %19, %cst_28 {dimension_numbers = #tpu.dot_dimension_numbers<[1], [0], [0], [1], [0, 0, 1, 1], [], []>} : vector<32x128xbf16>, vector<128x128xbf16>, vector<32x128xf32> -> vector<32x128xf32>
    %21 = arith.addf %15, %20 : vector<32x128xf32>
    %c0_29 = arith.constant 0 : index
    %c0_30 = arith.constant 0 : index
    %22 = vector.load %arg3[%c0_29, %c0_30] : memref<1x128xf32, #tpu.memory_space<vmem>>, vector<1x128xf32>
    %23 = vector.broadcast %22 : vector<1x128xf32> to vector<32x128xf32>
    %24 = arith.mulf %21, %23 : vector<32x128xf32>
    %c0_31 = arith.constant 0 : index
    %c0_32 = arith.constant 0 : index
    %25 = vector.load %arg4[%c0_31, %c0_32] : memref<1x128xf32, #tpu.memory_space<vmem>>, vector<1x128xf32>
    %26 = vector.broadcast %25 : vector<1x128xf32> to vector<32x128xf32>
    %27 = arith.addf %24, %26 : vector<32x128xf32>
    %cst_33 = arith.constant 0.000000e+00 : f32
    %28 = vector.broadcast %cst_33 : f32 to vector<32x128xf32>
    %29 = arith.maximumf %27, %28 : vector<32x128xf32>
    %cst_34 = arith.constant 0.000000e+00 : bf16
    %30 = vector.broadcast %cst_34 : bf16 to vector<2x1x128xbf16>
    %c0_35 = arith.constant 0 : index
    %c0_36 = arith.constant 0 : index
    %c0_37 = arith.constant 0 : index
    %31 = vector.load %arg13[%c0_35, %c0_36, %c0_37] : memref<2x18x128xbf16, #tpu.memory_space<vmem>>, vector<2x1x128xbf16>
    tpu.vector_store %arg13[%c0_35, %c0_36, %c0_37], %30 {strides = array<i32>} : memref<2x18x128xbf16, #tpu.memory_space<vmem>>, vector<2x1x128xbf16>,
    %c0_38 = arith.constant 0 : index
    %c17_39 = arith.constant 17 : index
    %c0_40 = arith.constant 0 : index
    %32 = vector.load %arg13[%c0_38, %c17_39, %c0_40] : memref<2x18x128xbf16, #tpu.memory_space<vmem>>, vector<2x1x128xbf16>
    tpu.vector_store %arg13[%c0_38, %c17_39, %c0_40], %30 {strides = array<i32>} : memref<2x18x128xbf16, #tpu.memory_space<vmem>>, vector<2x1x128xbf16>,
    %33 = vector.shape_cast %29 : vector<32x128xf32> to vector<2x16x128xf32>
    %34 = arith.truncf %33 : vector<2x16x128xf32> to vector<2x16x128xbf16>
    %c0_41 = arith.constant 0 : index
    %c1_42 = arith.constant 1 : index
    %c0_43 = arith.constant 0 : index
    %35 = vector.load %arg13[%c0_41, %c1_42, %c0_43] : memref<2x18x128xbf16, #tpu.memory_space<vmem>>, vector<2x16x128xbf16>
    tpu.vector_store %arg13[%c0_41, %c1_42, %c0_43], %34 {strides = array<i32>} : memref<2x18x128xbf16, #tpu.memory_space<vmem>>, vector<2x16x128xbf16>,
    %c0_44 = arith.constant 0 : index
    %c0_45 = arith.constant 0 : index
    %c0_46 = arith.constant 0 : index
    %36 = vector.load %arg13[%c0_44, %c0_45, %c0_46] : memref<2x18x128xbf16, #tpu.memory_space<vmem>>, vector<2x16x128xbf16>
    %37 = vector.shape_cast %36 : vector<2x16x128xbf16> to vector<32x128xbf16>
    %c0_47 = arith.constant 0 : index
    %c0_48 = arith.constant 0 : index
    %c0_49 = arith.constant 0 : index
    %38 = vector.load %arg5[%c0_47, %c0_48, %c0_49] : memref<3x128x128xbf16, #tpu.memory_space<vmem>>, vector<1x128x128xbf16>
    %39 = vector.shape_cast %38 : vector<1x128x128xbf16> to vector<128x128xbf16>
    %cst_50 = arith.constant dense<0.000000e+00> : vector<32x128xf32>
    %40 = tpu.matmul %37, %39, %cst_50 {dimension_numbers = #tpu.dot_dimension_numbers<[1], [0], [0], [1], [0, 0, 1, 1], [], []>} : vector<32x128xbf16>, vector<128x128xbf16>, vector<32x128xf32> -> vector<32x128xf32>
    %c0_51 = arith.constant 0 : index
    %c1_52 = arith.constant 1 : index
    %c0_53 = arith.constant 0 : index
    %41 = vector.load %arg13[%c0_51, %c1_52, %c0_53] : memref<2x18x128xbf16, #tpu.memory_space<vmem>>, vector<2x16x128xbf16>
    %42 = vector.shape_cast %41 : vector<2x16x128xbf16> to vector<32x128xbf16>
    %c1_54 = arith.constant 1 : index
    %c0_55 = arith.constant 0 : index
    %c0_56 = arith.constant 0 : index
    %43 = vector.load %arg5[%c1_54, %c0_55, %c0_56] : memref<3x128x128xbf16, #tpu.memory_space<vmem>>, vector<1x128x128xbf16>
    %44 = vector.shape_cast %43 : vector<1x128x128xbf16> to vector<128x128xbf16>
    %cst_57 = arith.constant dense<0.000000e+00> : vector<32x128xf32>
    %45 = tpu.matmul %42, %44, %cst_57 {dimension_numbers = #tpu.dot_dimension_numbers<[1], [0], [0], [1], [0, 0, 1, 1], [], []>} : vector<32x128xbf16>, vector<128x128xbf16>, vector<32x128xf32> -> vector<32x128xf32>
    %46 = arith.addf %40, %45 : vector<32x128xf32>
    %c0_58 = arith.constant 0 : index
    %c2_59 = arith.constant 2 : index
    %c0_60 = arith.constant 0 : index
    %47 = vector.load %arg13[%c0_58, %c2_59, %c0_60] : memref<2x18x128xbf16, #tpu.memory_space<vmem>>, vector<2x16x128xbf16>
    %48 = vector.shape_cast %47 : vector<2x16x128xbf16> to vector<32x128xbf16>
    %c2_61 = arith.constant 2 : index
    %c0_62 = arith.constant 0 : index
    %c0_63 = arith.constant 0 : index
    %49 = vector.load %arg5[%c2_61, %c0_62, %c0_63] : memref<3x128x128xbf16, #tpu.memory_space<vmem>>, vector<1x128x128xbf16>
    %50 = vector.shape_cast %49 : vector<1x128x128xbf16> to vector<128x128xbf16>
    %cst_64 = arith.constant dense<0.000000e+00> : vector<32x128xf32>
    %51 = tpu.matmul %48, %50, %cst_64 {dimension_numbers = #tpu.dot_dimension_numbers<[1], [0], [0], [1], [0, 0, 1, 1], [], []>} : vector<32x128xbf16>, vector<128x128xbf16>, vector<32x128xf32> -> vector<32x128xf32>
    %52 = arith.addf %46, %51 : vector<32x128xf32>
    %c0_65 = arith.constant 0 : index
    %c0_66 = arith.constant 0 : index
    %53 = vector.load %arg6[%c0_65, %c0_66] : memref<1x128xf32, #tpu.memory_space<vmem>>, vector<1x128xf32>
    %54 = vector.broadcast %53 : vector<1x128xf32> to vector<32x128xf32>
    %55 = arith.mulf %52, %54 : vector<32x128xf32>
    %c0_67 = arith.constant 0 : index
    %c0_68 = arith.constant 0 : index
    %56 = vector.load %arg7[%c0_67, %c0_68] : memref<1x128xf32, #tpu.memory_space<vmem>>, vector<1x128xf32>
    %57 = vector.broadcast %56 : vector<1x128xf32> to vector<32x128xf32>
    %58 = arith.addf %55, %57 : vector<32x128xf32>
    %c0_69 = arith.constant 0 : index
    %c0_70 = arith.constant 0 : index
    %c0_71 = arith.constant 0 : index
    %59 = vector.load %arg1[%c0_69, %c0_70, %c0_71] : memref<2x16x128xbf16, #tpu.memory_space<vmem>>, vector<2x16x128xbf16>
    %60 = vector.shape_cast %59 : vector<2x16x128xbf16> to vector<32x128xbf16>
    %c0_72 = arith.constant 0 : index
    %c0_73 = arith.constant 0 : index
    %61 = vector.load %arg8[%c0_72, %c0_73] : memref<128x128xbf16, #tpu.memory_space<vmem>>, vector<128x128xbf16>
    %cst_74 = arith.constant dense<0.000000e+00> : vector<32x128xf32>
    %62 = tpu.matmul %60, %61, %cst_74 {dimension_numbers = #tpu.dot_dimension_numbers<[1], [0], [0], [1], [0, 0, 1, 1], [], []>} : vector<32x128xbf16>, vector<128x128xbf16>, vector<32x128xf32> -> vector<32x128xf32>
    %c0_75 = arith.constant 0 : index
    %c0_76 = arith.constant 0 : index
    %63 = vector.load %arg9[%c0_75, %c0_76] : memref<1x128xf32, #tpu.memory_space<vmem>>, vector<1x128xf32>
    %64 = vector.broadcast %63 : vector<1x128xf32> to vector<32x128xf32>
    %65 = arith.mulf %62, %64 : vector<32x128xf32>
    %c0_77 = arith.constant 0 : index
    %c0_78 = arith.constant 0 : index
    %66 = vector.load %arg10[%c0_77, %c0_78] : memref<1x128xf32, #tpu.memory_space<vmem>>, vector<1x128xf32>
    %67 = vector.broadcast %66 : vector<1x128xf32> to vector<32x128xf32>
    %68 = arith.addf %65, %67 : vector<32x128xf32>
    %69 = arith.addf %58, %68 : vector<32x128xf32>
    %cst_79 = arith.constant 0.000000e+00 : f32
    %70 = vector.broadcast %cst_79 : f32 to vector<32x128xf32>
    %71 = arith.maximumf %69, %70 : vector<32x128xf32>
    %72 = vector.shape_cast %71 : vector<32x128xf32> to vector<2x16x128xf32>
    %73 = arith.truncf %72 : vector<2x16x128xf32> to vector<2x16x128xbf16>
    %c0_80 = arith.constant 0 : index
    %c0_81 = arith.constant 0 : index
    %c0_82 = arith.constant 0 : index
    %74 = vector.load %arg11[%c0_80, %c0_81, %c0_82] : memref<2x16x128xbf16, #tpu.memory_space<vmem>>, vector<2x16x128xbf16>
    tpu.vector_store %arg11[%c0_80, %c0_81, %c0_82], %73 {strides = array<i32>} : memref<2x16x128xbf16, #tpu.memory_space<vmem>>, vector<2x16x128xbf16>,
    return
  }
  func.func @transform_0(%arg0: i32) -> (i32, i32, i32) {
    %c0_i32 = arith.constant 0 : i32
    %c0_i32_0 = arith.constant 0 : i32
    %c0_i32_1 = arith.constant 0 : i32
    return %arg0, %c0_i32, %c0_i32_0 : i32, i32, i32
  }
  func.func @transform_1(%arg0: i32) -> (i32, i32, i32) {
    %c0_i32 = arith.constant 0 : i32
    %c0_i32_0 = arith.constant 0 : i32
    %c0_i32_1 = arith.constant 0 : i32
    %c0_i32_2 = arith.constant 0 : i32
    return %c0_i32, %c0_i32_0, %c0_i32_1 : i32, i32, i32
  }
  func.func @transform_2(%arg0: i32) -> (i32, i32) {
    %c0_i32 = arith.constant 0 : i32
    %c0_i32_0 = arith.constant 0 : i32
    %c0_i32_1 = arith.constant 0 : i32
    return %c0_i32, %c0_i32_0 : i32, i32
  }
  func.func @transform_3(%arg0: i32) -> (i32, i32) {
    %c0_i32 = arith.constant 0 : i32
    %c0_i32_0 = arith.constant 0 : i32
    %c0_i32_1 = arith.constant 0 : i32
    return %c0_i32, %c0_i32_0 : i32, i32
  }
  func.func @transform_4(%arg0: i32) -> (i32, i32, i32) {
    %c0_i32 = arith.constant 0 : i32
    %c0_i32_0 = arith.constant 0 : i32
    %c0_i32_1 = arith.constant 0 : i32
    %c0_i32_2 = arith.constant 0 : i32
    return %c0_i32, %c0_i32_0, %c0_i32_1 : i32, i32, i32
  }
  func.func @transform_5(%arg0: i32) -> (i32, i32) {
    %c0_i32 = arith.constant 0 : i32
    %c0_i32_0 = arith.constant 0 : i32
    %c0_i32_1 = arith.constant 0 : i32
    return %c0_i32, %c0_i32_0 : i32, i32
  }
  func.func @transform_6(%arg0: i32) -> (i32, i32) {
    %c0_i32 = arith.constant 0 : i32
    %c0_i32_0 = arith.constant 0 : i32
    %c0_i32_1 = arith.constant 0 : i32
    return %c0_i32, %c0_i32_0 : i32, i32
  }
  func.func @transform_7(%arg0: i32) -> (i32, i32) {
    %c0_i32 = arith.constant 0 : i32
    %c0_i32_0 = arith.constant 0 : i32
    %c0_i32_1 = arith.constant 0 : i32
    return %c0_i32, %c0_i32_0 : i32, i32
  }
  func.func @transform_8(%arg0: i32) -> (i32, i32) {
    %c0_i32 = arith.constant 0 : i32
    %c0_i32_0 = arith.constant 0 : i32
    %c0_i32_1 = arith.constant 0 : i32
    return %c0_i32, %c0_i32_0 : i32, i32
  }
  func.func @transform_9(%arg0: i32) -> (i32, i32) {
    %c0_i32 = arith.constant 0 : i32
    %c0_i32_0 = arith.constant 0 : i32
    %c0_i32_1 = arith.constant 0 : i32
    return %c0_i32, %c0_i32_0 : i32, i32
  }
  func.func @transform_10(%arg0: i32) -> (i32, i32, i32) {
    %c0_i32 = arith.constant 0 : i32
    %c0_i32_0 = arith.constant 0 : i32
    %c0_i32_1 = arith.constant 0 : i32
    return %arg0, %c0_i32, %c0_i32_0 : i32, i32, i32
  }
}

</mosaic_0001>

<llo_original>
// kernel: tpu_custom_call.1
$region0: #{tpu_custom_call.1}
  #allocation0 [shape = 'u32[]', space=smem, size = 0x4, offset = 0x4, fixed_abs, tag = 'smem constant byte address 0x4 - core index']
  #allocation1 [shape = 'u32[144,128]{1,0:T(1,128)}', space=vmem, size = 0x12000, scoped, tag = 'internal scratch']
  #allocation2 [shape = 'bf16[2,18,128]{2,1,0:T(8,128)(2,1)}', space=vmem, size = 0x3000, scoped, tag = 'scratch operand']
  #allocation3 [shape = 'bf16[2,18,128]{2,1,0:T(8,128)(2,1)}', space=vmem, size = 0x3000, scoped, tag = 'scratch operand']
  %s0 = inlined_call_operand.hbm [shape: bf16[2,16,128], index: 0, kind: input, shape index: {}]
  %s1 = inlined_call_operand.hbm [shape: bf16[3,128,128], index: 1, kind: input, shape index: {}]
  %s2 = inlined_call_operand.vmem [shape: f32[1,128], index: 2, kind: input, shape index: {}]
  %s3 = inlined_call_operand.vmem [shape: f32[1,128], index: 3, kind: input, shape index: {}]
  %s4 = inlined_call_operand.hbm [shape: bf16[3,128,128], index: 4, kind: input, shape index: {}]
  %s5 = inlined_call_operand.vmem [shape: f32[1,128], index: 5, kind: input, shape index: {}]
  %s6 = inlined_call_operand.vmem [shape: f32[1,128], index: 6, kind: input, shape index: {}]
  %s7 = inlined_call_operand.hbm [shape: bf16[128,128], index: 7, kind: input, shape index: {}]
  %s8 = inlined_call_operand.vmem [shape: f32[1,128], index: 8, kind: input, shape index: {}]
  %s9 = inlined_call_operand.vmem [shape: f32[1,128], index: 9, kind: input, shape index: {}]
  %s10 = inlined_call_operand.hbm [shape: bf16[2,16,128], index: 10, kind: output, shape index: {}]
  %s11 = sld [smem:[#allocation0]]
  $region66: #{tpu_custom_call.1} parent=0
    _
  %s13 = ssub.s32 1, %s11
  %s14 = scalar_select 0, %s13, %s11
  $region1: #{tpu_custom_call.1} parent=0
    #allocation4 [shape = 'u8[8192]{0}', space=vmem, size = 0x2000, scoped, tag = 'input window, operand 0, single buffered']
    #allocation5 [shape = 's32[1]{0}', space=sflag, size = 0x4, scoped, tag = 'scoped memory for tpu_custom_call.1']
    #allocation6 [shape = 's32[1]{0}', space=sflag, size = 0x4, scoped, tag = 'scoped memory for tpu_custom_call.1']
    #allocation7 [shape = 'u8[98304]{0}', space=vmem, size = 0x18000, scoped, tag = 'input window, operand 1, single buffered']
    #allocation8 [shape = 's32[1]{0}', space=sflag, size = 0x4, scoped, tag = 'scoped memory for tpu_custom_call.1']
    #allocation9 [shape = 'u8[98304]{0}', space=vmem, size = 0x18000, scoped, tag = 'input window, operand 4, single buffered']
    #allocation10 [shape = 'u8[32768]{0}', space=vmem, size = 0x8000, scoped, tag = 'input window, operand 7, single buffered']
    #allocation11 [shape = 's32[1]{0}', space=sflag, size = 0x4, scoped, tag = 'scoped memory for tpu_custom_call.1']
    #allocation12 [shape = 'u8[8192]{0}', space=vmem, size = 0x2000, scoped, tag = 'output window, operand 0, single buffered']
    %15 = vsyncpa [#allocation5], 0
    %16 = vsyncpa [#allocation8], 0
    %17 = vsyncpa [#allocation11], 0
    %18 = vsyncpa [#allocation6], 0
    // Predicated region
    $region2: #{tpu_custom_call.1} parent=1 // pred_check
      _
    $region3: #{tpu_custom_call.1} parent=1 // pred_check_branch
      %20 = sbr.rel (0) target = $region5
    $region4: #{tpu_custom_call.1} parent=1 // pred_region
      %s22 = ssub.s32 256, 256
      %23 = vsyncadd [#allocation5], %s22
      %s24 = sshll.u32 [#allocation4], 4
      %s25 = int_to_ptr.vmem [resolvable:$true] %s24
      %30 = dma.hbm_to_vmem [thread:$0]  %s0, 256, %s25, [#allocation5], 64, 64, 4
    $region5: #{tpu_custom_call.1} parent=1 // pred_fallthru
      _
    // Predicated region
    $region6: #{tpu_custom_call.1} parent=1 // pred_check
      _
    $region7: #{tpu_custom_call.1} parent=1 // pred_check_branch
      %32 = sbr.rel (0) target = $region9
    $region8: #{tpu_custom_call.1} parent=1 // pred_region
      %s34 = ssub.s32 3072, 3072
      %35 = vsyncadd [#allocation8], %s34
      %s36 = sshll.u32 [#allocation7], 4
      %s37 = int_to_ptr.vmem [resolvable:$true] %s36
      %42 = dma.hbm_to_vmem [thread:$0]  %s1, 3072, %s37, [#allocation8], 64, 64, 4
    $region9: #{tpu_custom_call.1} parent=1 // pred_fallthru
      _
    // Predicated region
    $region10: #{tpu_custom_call.1} parent=1 // pred_check
      _
    $region11: #{tpu_custom_call.1} parent=1 // pred_check_branch
      %44 = sbr.rel (0) target = $region13
    $region12: #{tpu_custom_call.1} parent=1 // pred_region
      _
    $region13: #{tpu_custom_call.1} parent=1 // pred_fallthru
      _
    // Predicated region
    $region14: #{tpu_custom_call.1} parent=1 // pred_check
      _
    $region15: #{tpu_custom_call.1} parent=1 // pred_check_branch
      %46 = sbr.rel (0) target = $region17
    $region16: #{tpu_custom_call.1} parent=1 // pred_region
      _
    $region17: #{tpu_custom_call.1} parent=1 // pred_fallthru
      _
    // Predicated region
    $region18: #{tpu_custom_call.1} parent=1 // pred_check
      _
    $region19: #{tpu_custom_call.1} parent=1 // pred_check_branch
      %48 = sbr.rel (0) target = $region21
    $region20: #{tpu_custom_call.1} parent=1 // pred_region
      %s50 = ssub.s32 3072, 3072
      %51 = vsyncadd [#allocation8], %s50
      %s52 = sshll.u32 [#allocation9], 4
      %s53 = int_to_ptr.vmem [resolvable:$true] %s52
      %58 = dma.hbm_to_vmem [thread:$0]  %s4, 3072, %s53, [#allocation8], 64, 64, 4
    $region21: #{tpu_custom_call.1} parent=1 // pred_fallthru
      _
    // Predicated region
    $region22: #{tpu_custom_call.1} parent=1 // pred_check
      _
    $region23: #{tpu_custom_call.1} parent=1 // pred_check_branch
      %60 = sbr.rel (0) target = $region25
    $region24: #{tpu_custom_call.1} parent=1 // pred_region
      _
    $region25: #{tpu_custom_call.1} parent=1 // pred_fallthru
      _
    // Predicated region
    $region26: #{tpu_custom_call.1} parent=1 // pred_check
      _
    $region27: #{tpu_custom_call.1} parent=1 // pred_check_branch
      %62 = sbr.rel (0) target = $region29
    $region28: #{tpu_custom_call.1} parent=1 // pred_region
      _
    $region29: #{tpu_custom_call.1} parent=1 // pred_fallthru
      _
    // Predicated region
    $region30: #{tpu_custom_call.1} parent=1 // pred_check
      _
    $region31: #{tpu_custom_call.1} parent=1 // pred_check_branch
      %64 = sbr.rel (0) target = $region33
    $region32: #{tpu_custom_call.1} parent=1 // pred_region
      %s66 = ssub.s32 1024, 1024
      %67 = vsyncadd [#allocation11], %s66
      %s68 = sshll.u32 [#allocation10], 4
      %s69 = int_to_ptr.vmem [resolvable:$true] %s68
      %74 = dma.hbm_to_vmem [thread:$0]  %s7, 1024, %s69, [#allocation11], 64, 64, 4
    $region33: #{tpu_custom_call.1} parent=1 // pred_fallthru
      _
    // Predicated region
    $region34: #{tpu_custom_call.1} parent=1 // pred_check
      _
    $region35: #{tpu_custom_call.1} parent=1 // pred_check_branch
      %76 = sbr.rel (0) target = $region37
    $region36: #{tpu_custom_call.1} parent=1 // pred_region
      _
    $region37: #{tpu_custom_call.1} parent=1 // pred_fallthru
      _
    // Predicated region
    $region38: #{tpu_custom_call.1} parent=1 // pred_check
      _
    $region39: #{tpu_custom_call.1} parent=1 // pred_check_branch
      %78 = sbr.rel (0) target = $region41
    $region40: #{tpu_custom_call.1} parent=1 // pred_region
      _
    $region41: #{tpu_custom_call.1} parent=1 // pred_fallthru
      _
    // Predicated region
    $region42: #{tpu_custom_call.1} parent=1 // pred_check
      _
    $region43: #{tpu_custom_call.1} parent=1 // pred_check_branch
      %80 = sbr.rel (0) target = $region45
    $region44: #{tpu_custom_call.1} parent=1 // pred_region
      %81 = dma.done [#allocation5], 256
    $region45: #{tpu_custom_call.1} parent=1 // pred_fallthru
      _
    // Predicated region
    $region46: #{tpu_custom_call.1} parent=1 // pred_check
      _
    $region47: #{tpu_custom_call.1} parent=1 // pred_check_branch
      %83 = sbr.rel (0) target = $region49
    $region48: #{tpu_custom_call.1} parent=1 // pred_region
      %84 = dma.done [#allocation8], 3072
    $region49: #{tpu_custom_call.1} parent=1 // pred_fallthru
      _
    // Predicated region
    $region50: #{tpu_custom_call.1} parent=1 // pred_check
      _
    $region51: #{tpu_custom_call.1} parent=1 // pred_check_branch
      %86 = sbr.rel (0) target = $region53
    $region52: #{tpu_custom_call.1} parent=1 // pred_region
      %87 = dma.done [#allocation8], 3072
    $region53: #{tpu_custom_call.1} parent=1 // pred_fallthru
      _
    // Predicated region
    $region54: #{tpu_custom_call.1} parent=1 // pred_check
      _
    $region55: #{tpu_custom_call.1} parent=1 // pred_check_branch
      %89 = sbr.rel (0) target = $region57
    $region56: #{tpu_custom_call.1} parent=1 // pred_region
      %90 = dma.done [#allocation11], 1024
    $region57: #{tpu_custom_call.1} parent=1 // pred_fallthru
      _
    %vm92 = vcmask 1040384
    %vm93 = vsmask.f32 256
    %vm94 = vmand %vm92, %vm93
    %v95 = vld [vmem:[#allocation2] sm:$0x1]
    %v96 = vsel %vm94, 0, %v95
    %97 = vst [vmem:[#allocation2] sm:$0x1] %v96
    %v98 = vld [vmem:[#allocation2 + $0xc] sm:$0x1]
    %v99 = vsel %vm94, 0, %v98
    %100 = vst [vmem:[#allocation2 + $0xc] sm:$0x1] %v99
    %vm101 = vsmask.f32 7938
    %vm102 = vmand %vm92, %vm101
    %v103 = vld [vmem:[#allocation2 + $0x8] sm:$0x1]
    %v104 = vsel %vm102, 0, %v103
    %105 = vst [vmem:[#allocation2 + $0x8] sm:$0x1] %v104
    %v106 = vld [vmem:[#allocation2 + $0x14] sm:$0x1]
    %v107 = vsel %vm102, 0, %v106
    %108 = vst [vmem:[#allocation2 + $0x14] sm:$0x1] %v107
    %v109 = vld [vmem:[#allocation4] sm:$0xf]
    %v110 = vld [vmem:[#allocation4 + $0x4] sm:$0xf]
    %v111 = vld [vmem:[#allocation4 + $0x8] sm:$0xf]
    %v112 = vld [vmem:[#allocation4 + $0xc] sm:$0xf]
    %vm113 = vsmask.f32 4368
    %vm114 = vmor %vm93, %vm113
    %v116 = vshrl.u32 %v109, 16
    %v118 = vrot.slane %v116, 7
    %v119 = vshll.u32 %v109, 16
    %v121 = vor.u32 %v118, %v119
    %v122 = vrot.slane %v118, 4
    %v124 = vshrl.u32 %v110, 16
    %v126 = vrot.slane %v124, 7
    %v127 = vshll.u32 %v110, 16
    %v129 = vor.u32 %v126, %v127
    %v130 = vsel %vm114, %v122, %v129
    %v131 = vrot.slane %v126, 4
    %v133 = vshrl.u32 %v111, 16
    %v135 = vrot.slane %v133, 7
    %v136 = vshll.u32 %v111, 16
    %v138 = vor.u32 %v135, %v136
    %v139 = vrot.slane %v135, 4
    %v141 = vshrl.u32 %v112, 16
    %v143 = vrot.slane %v141, 7
    %v144 = vshll.u32 %v112, 16
    %v146 = vor.u32 %v143, %v144
    %v147 = vsel %vm114, %v139, %v146
    %v148 = vrot.slane %v143, 4
    %vm155 = vcmask 1043456
    %vm156 = vmand %vm155, %vm101
    %v157 = vld [vmem:[#allocation2] sm:$0xf]
    %v158 = vsel %vm156, %v121, %v157
    %159 = vst [vmem:[#allocation2] sm:$0xf] %v158
    %160 = vst [vmem:[#allocation2 + $0x4] sm:$0xf] %v130
    %v161 = vld [vmem:[#allocation2 + $0x8] sm:$0x1]
    %v162 = vsel %vm94, %v131, %v161
    %163 = vst [vmem:[#allocation2 + $0x8] sm:$0x1] %v162
    %v164 = vld [vmem:[#allocation2 + $0xc] sm:$0xf]
    %v165 = vsel %vm156, %v138, %v164
    %166 = vst [vmem:[#allocation2 + $0xc] sm:$0xf] %v165
    %167 = vst [vmem:[#allocation2 + $0x10] sm:$0xf] %v147
    %v168 = vld [vmem:[#allocation2 + $0x14] sm:$0x1]
    %v169 = vsel %vm94, %v148, %v168
    %170 = vst [vmem:[#allocation2 + $0x14] sm:$0x1] %v169
    %v171 = vld [vmem:[#allocation2] sm:$0xf]
    %v172 = vld [vmem:[#allocation2 + $0x4] sm:$0xf]
    %v173 = vld [vmem:[#allocation2 + $0xc] sm:$0xf]
    %v174 = vld [vmem:[#allocation2 + $0x10] sm:$0xf]
    %v175 = vld [vmem:[#allocation7] sm:$0xf]
    %v176 = vld [vmem:[#allocation7 + $0x4] sm:$0xf]
    %v177 = vld [vmem:[#allocation7 + $0x8] sm:$0xf]
    %v178 = vld [vmem:[#allocation7 + $0xc] sm:$0xf]
    %v179 = vld [vmem:[#allocation7 + $0x10] sm:$0xf]
    %v180 = vld [vmem:[#allocation7 + $0x14] sm:$0xf]
    %v181 = vld [vmem:[#allocation7 + $0x18] sm:$0xf]
    %v182 = vld [vmem:[#allocation7 + $0x1c] sm:$0xf]
    %v183 = vld [vmem:[#allocation7 + $0x20] sm:$0xf]
    %v184 = vld [vmem:[#allocation7 + $0x24] sm:$0xf]
    %v185 = vld [vmem:[#allocation7 + $0x28] sm:$0xf]
    %v186 = vld [vmem:[#allocation7 + $0x2c] sm:$0xf]
    %v187 = vld [vmem:[#allocation7 + $0x30] sm:$0xf]
    %v188 = vld [vmem:[#allocation7 + $0x34] sm:$0xf]
    %v189 = vld [vmem:[#allocation7 + $0x38] sm:$0xf]
    %v190 = vld [vmem:[#allocation7 + $0x3c] sm:$0xf]
    %v191 = vld [vmem:[#allocation2 + $0x8] sm:$0x1]
    %v192 = vld [vmem:[#allocation2 + $0x14] sm:$0x1]
    %vm193 = vsmask.f32 3328
    %vm194 = vsmask.f32 7440
    %vm195 = vmor %vm193, %vm194
    %v197 = vshrl.u32 %v171, 16
    %v199 = vrot.slane %v197, 4
    %v200 = vshll.u32 %v171, 16
    %v202 = vrot.slane %v200, 5
    %v203 = vor.u32 %v199, %v202
    %v204 = vrot.slane %v203, 4
    %v206 = vshll.u32 %v172, 16
    %v208 = vrot.slane %v206, 5
    %v209 = vsel %vm195, %v204, %v208
    %v210 = vshrl.u32 %v172, 16
    %v212 = vrot.slane %v210, 4
    %v213 = vor.u32 %v212, %v208
    %v214 = vrot.slane %v213, 4
    %v216 = vshll.u32 %v191, 16
    %v218 = vrot.slane %v216, 5
    %v219 = vsel %vm195, %v214, %v218
    %v221 = vshrl.u32 %v173, 16
    %v223 = vrot.slane %v221, 4
    %v224 = vshll.u32 %v173, 16
    %v226 = vrot.slane %v224, 5
    %v227 = vor.u32 %v223, %v226
    %v228 = vrot.slane %v227, 4
    %v230 = vshll.u32 %v174, 16
    %v232 = vrot.slane %v230, 5
    %v233 = vsel %vm195, %v228, %v232
    %v234 = vshrl.u32 %v174, 16
    %v236 = vrot.slane %v234, 4
    %v237 = vor.u32 %v236, %v232
    %v238 = vrot.slane %v237, 4
    %v240 = vshll.u32 %v192, 16
    %v242 = vrot.slane %v240, 5
    %v243 = vsel %vm195, %v238, %v242
    %s244 = scalar_lea.vmem [#allocation7], 64
    %v245 = vld [vmem:[%s244] sm:$0xf]
    %v246 = vld [vmem:[%s244 + $0x4] sm:$0xf]
    %v247 = vld [vmem:[%s244 + $0x8] sm:$0xf]
    %v248 = vld [vmem:[%s244 + $0xc] sm:$0xf]
    %v249 = vld [vmem:[%s244 + $0x10] sm:$0xf]
    %v250 = vld [vmem:[%s244 + $0x14] sm:$0xf]
    %v251 = vld [vmem:[%s244 + $0x18] sm:$0xf]
    %v252 = vld [vmem:[%s244 + $0x1c] sm:$0xf]
    %v253 = vld [vmem:[%s244 + $0x20] sm:$0xf]
    %v254 = vld [vmem:[%s244 + $0x24] sm:$0xf]
    %v255 = vld [vmem:[%s244 + $0x28] sm:$0xf]
    %v256 = vld [vmem:[%s244 + $0x2c] sm:$0xf]
    %v257 = vld [vmem:[%s244 + $0x30] sm:$0xf]
    %v258 = vld [vmem:[%s244 + $0x34] sm:$0xf]
    %v259 = vld [vmem:[%s244 + $0x38] sm:$0xf]
    %v260 = vld [vmem:[%s244 + $0x3c] sm:$0xf]
    %v261 = vunpack.c.l.b16 %v209
    %v262 = vunpack.c.l.b16 %v219
    %v263 = vunpack.c.l.b16 %v233
    %v264 = vunpack.c.l.b16 %v243
    %v265 = vpack.c.b16 %v262, %v261
    %v266 = vpack.c.b16 %v264, %v263
    %v285 = vunpack.c.l.b16 %v245
    %v286 = vunpack.c.l.b16 %v246
    %v287 = vunpack.c.l.b16 %v247
    %v288 = vunpack.c.l.b16 %v248
    %v289 = vunpack.c.l.b16 %v249
    %v290 = vunpack.c.l.b16 %v250
    %v291 = vunpack.c.l.b16 %v251
    %v292 = vunpack.c.l.b16 %v252
    %v293 = vunpack.c.l.b16 %v253
    %v294 = vunpack.c.l.b16 %v254
    %v295 = vunpack.c.l.b16 %v255
    %v296 = vunpack.c.l.b16 %v256
    %v297 = vunpack.c.l.b16 %v257
    %v298 = vunpack.c.l.b16 %v258
    %v299 = vunpack.c.l.b16 %v259
    %v300 = vunpack.c.l.b16 %v260
    %v301 = vpack.c.b16 %v286, %v285
    %v302 = vpack.c.b16 %v288, %v287
    %v303 = vpack.c.b16 %v290, %v289
    %v304 = vpack.c.b16 %v292, %v291
    %v305 = vpack.c.b16 %v294, %v293
    %v306 = vpack.c.b16 %v296, %v295
    %v307 = vpack.c.b16 %v298, %v297
    %v308 = vpack.c.b16 %v300, %v299
    %317 = vmatprep.subr.bf16.mxu0 0
    %318 = vmatpush1.bf16.msra.mxu0 %v301
    %319 = vmatprep.subr.bf16.mxu0 0
    %320 = vmatpush1.bf16.msra.mxu0 %v302
    %321 = vmatprep.subr.bf16.mxu0 0
    %322 = vmatpush1.bf16.msra.mxu0 %v303
    %323 = vmatprep.subr.bf16.mxu0 0
    %324 = vmatpush1.bf16.msra.mxu0 %v304
    %325 = vmatprep.subr.bf16.mxu0 0
    %326 = vmatpush1.bf16.msra.mxu0 %v305
    %327 = vmatprep.subr.bf16.mxu0 0
    %328 = vmatpush1.bf16.msra.mxu0 %v306
    %329 = vmatprep.subr.bf16.mxu0 0
    %330 = vmatpush1.bf16.msra.mxu0 %v307
    %331 = vmatprep.subr.bf16.mxu0 0
    %332 = vmatpush1.bf16.msra.mxu0 %v308
    %333 = vmatprep.subr.bf16.mxu0 0
    %334 = vmatpush1.bf16.msra.mxu0 0
    %335 = vmatprep.subr.bf16.mxu0 0
    %336 = vmatpush1.bf16.msra.mxu0 0
    %337 = vmatprep.subr.bf16.mxu0 0
    %338 = vmatpush1.bf16.msra.mxu0 0
    %339 = vmatprep.subr.bf16.mxu0 0
    %340 = vmatpush1.bf16.msra.mxu0 0
    %341 = vmatprep.subr.bf16.mxu0 0
    %342 = vmatpush1.bf16.msra.mxu0 0
    %343 = vmatprep.subr.bf16.mxu0 0
    %344 = vmatpush1.bf16.msra.mxu0 0
    %345 = vmatprep.subr.bf16.mxu0 0
    %346 = vmatpush1.bf16.msra.mxu0 0
    %347 = vmatprep.subr.bf16.mxu0 0
    %348 = vmatpush1.bf16.msra.mxu0 0
    %349 = vmatprep.mubr.bf16.mxu0 0
    %350 = vmatmul.mubr.bf16.gmra.mrb[0].mxu0 %v265
    %v351 = vpop.f32.mrb[0].mxu0
    %v352 = vadd.f32 0.0, %v351
    %v353 = vpop.f32.mrb[0].mxu0
    %v354 = vpop.f32.mrb[0].mxu0
    %v355 = vadd.f32 0.0, %v354
    %v356 = vpop.f32.mrb[0].mxu0
    %357 = vmatprep.mubr.bf16.mxu0 0
    %358 = vmatmul.mubr.bf16.gmra.mrb[0].mxu0 %v266
    %v359 = vpop.f32.mrb[0].mxu0
    %v360 = vadd.f32 0.0, %v359
    %v361 = vpop.f32.mrb[0].mxu0
    %v362 = vpop.f32.mrb[0].mxu0
    %v363 = vadd.f32 0.0, %v362
    %v364 = vpop.f32.mrb[0].mxu0
    %365 = vdwg.mxu0
    %v370 = vunpack.c.l.b16 %v171
    %v371 = vunpack.c.l.b16 %v172
    %v372 = vunpack.c.l.b16 %v173
    %v373 = vunpack.c.l.b16 %v174
    %v374 = vpack.c.b16 %v371, %v370
    %v375 = vpack.c.b16 %v373, %v372
    %v394 = vunpack.c.l.b16 %v175
    %v395 = vunpack.c.l.b16 %v176
    %v396 = vunpack.c.l.b16 %v177
    %v397 = vunpack.c.l.b16 %v178
    %v398 = vunpack.c.l.b16 %v179
    %v399 = vunpack.c.l.b16 %v180
    %v400 = vunpack.c.l.b16 %v181
    %v401 = vunpack.c.l.b16 %v182
    %v402 = vunpack.c.l.b16 %v183
    %v403 = vunpack.c.l.b16 %v184
    %v404 = vunpack.c.l.b16 %v185
    %v405 = vunpack.c.l.b16 %v186
    %v406 = vunpack.c.l.b16 %v187
    %v407 = vunpack.c.l.b16 %v188
    %v408 = vunpack.c.l.b16 %v189
    %v409 = vunpack.c.l.b16 %v190
    %v410 = vpack.c.b16 %v395, %v394
    %v411 = vpack.c.b16 %v397, %v396
    %v412 = vpack.c.b16 %v399, %v398
    %v413 = vpack.c.b16 %v401, %v400
    %v414 = vpack.c.b16 %v403, %v402
    %v415 = vpack.c.b16 %v405, %v404
    %v416 = vpack.c.b16 %v407, %v406
    %v417 = vpack.c.b16 %v409, %v408
    %426 = vmatprep.subr.bf16.mxu0 0
    %427 = vmatpush1.bf16.msra.mxu0 %v410
    %428 = vmatprep.subr.bf16.mxu0 0
    %429 = vmatpush1.bf16.msra.mxu0 %v411
    %430 = vmatprep.subr.bf16.mxu0 0
    %431 = vmatpush1.bf16.msra.mxu0 %v412
    %432 = vmatprep.subr.bf16.mxu0 0
    %433 = vmatpush1.bf16.msra.mxu0 %v413
    %434 = vmatprep.subr.bf16.mxu0 0
    %435 = vmatpush1.bf16.msra.mxu0 %v414
    %436 = vmatprep.subr.bf16.mxu0 0
    %437 = vmatpush1.bf16.msra.mxu0 %v415
    %438 = vmatprep.subr.bf16.mxu0 0
    %439 = vmatpush1.bf16.msra.mxu0 %v416
    %440 = vmatprep.subr.bf16.mxu0 0
    %441 = vmatpush1.bf16.msra.mxu0 %v417
    %442 = vmatprep.subr.bf16.mxu0 0
    %443 = vmatpush1.bf16.msra.mxu0 0
    %444 = vmatprep.subr.bf16.mxu0 0
    %445 = vmatpush1.bf16.msra.mxu0 0
    %446 = vmatprep.subr.bf16.mxu0 0
    %447 = vmatpush1.bf16.msra.mxu0 0
    %448 = vmatprep.subr.bf16.mxu0 0
    %449 = vmatpush1.bf16.msra.mxu0 0
    %450 = vmatprep.subr.bf16.mxu0 0
    %451 = vmatpush1.bf16.msra.mxu0 0
    %452 = vmatprep.subr.bf16.mxu0 0
    %453 = vmatpush1.bf16.msra.mxu0 0
    %454 = vmatprep.subr.bf16.mxu0 0
    %455 = vmatpush1.bf16.msra.mxu0 0
    %456 = vmatprep.subr.bf16.mxu0 0
    %457 = vmatpush1.bf16.msra.mxu0 0
    %458 = vmatprep.mubr.bf16.mxu0 0
    %459 = vmatmul.mubr.bf16.gmra.mrb[0].mxu0 %v374
    %v460 = vpop.f32.mrb[0].mxu0
    %v461 = vadd.f32 %v352, %v460
    %v462 = vpop.f32.mrb[0].mxu0
    %v463 = vpop.f32.mrb[0].mxu0
    %v464 = vadd.f32 %v355, %v463
    %v465 = vpop.f32.mrb[0].mxu0
    %466 = vmatprep.mubr.bf16.mxu0 0
    %467 = vmatmul.mubr.bf16.gmra.mrb[0].mxu0 %v375
    %v468 = vpop.f32.mrb[0].mxu0
    %v469 = vadd.f32 %v360, %v468
    %v470 = vpop.f32.mrb[0].mxu0
    %v471 = vpop.f32.mrb[0].mxu0
    %v472 = vadd.f32 %v363, %v471
    %v473 = vpop.f32.mrb[0].mxu0
    %474 = vdwg.mxu0
    %v475 = vld [vmem:[#allocation2] sm:$0xe]
    %v476 = vld [vmem:[#allocation2 + $0xc] sm:$0xe]
    %vm481 = vcmask 1042432
    %vm482 = vcmask 1046532
    %vm483 = vmor %vm481, %vm482
    %v484 = vrot.slane %v475, 5
    %v485 = vrot.slane %v484, 4
    %v486 = vrot.slane %v172, 5
    %v487 = vsel %vm483, %v485, %v486
    %v488 = vrot.slane %v486, 4
    %v489 = vrot.slane %v191, 5
    %v490 = vsel %vm483, %v488, %v489
    %v491 = vrot.slane %v476, 5
    %v492 = vrot.slane %v491, 4
    %v493 = vrot.slane %v174, 5
    %v494 = vsel %vm483, %v492, %v493
    %v495 = vrot.slane %v493, 4
    %v496 = vrot.slane %v192, 5
    %v497 = vsel %vm483, %v495, %v496
    %s498 = scalar_lea.vmem [#allocation7], 128
    %v499 = vld [vmem:[%s498] sm:$0xf]
    %v500 = vld [vmem:[%s498 + $0x4] sm:$0xf]
    %v501 = vld [vmem:[%s498 + $0x8] sm:$0xf]
    %v502 = vld [vmem:[%s498 + $0xc] sm:$0xf]
    %v503 = vld [vmem:[%s498 + $0x10] sm:$0xf]
    %v504 = vld [vmem:[%s498 + $0x14] sm:$0xf]
    %v505 = vld [vmem:[%s498 + $0x18] sm:$0xf]
    %v506 = vld [vmem:[%s498 + $0x1c] sm:$0xf]
    %v507 = vld [vmem:[%s498 + $0x20] sm:$0xf]
    %v508 = vld [vmem:[%s498 + $0x24] sm:$0xf]
    %v509 = vld [vmem:[%s498 + $0x28] sm:$0xf]
    %v510 = vld [vmem:[%s498 + $0x2c] sm:$0xf]
    %v511 = vld [vmem:[%s498 + $0x30] sm:$0xf]
    %v512 = vld [vmem:[%s498 + $0x34] sm:$0xf]
    %v513 = vld [vmem:[%s498 + $0x38] sm:$0xf]
    %v514 = vld [vmem:[%s498 + $0x3c] sm:$0xf]
    %v515 = vunpack.c.l.b16 %v487
    %v516 = vunpack.c.l.b16 %v490
    %v517 = vunpack.c.l.b16 %v494
    %v518 = vunpack.c.l.b16 %v497
    %v519 = vpack.c.b16 %v516, %v515
    %v520 = vpack.c.b16 %v518, %v517
    %v539 = vunpack.c.l.b16 %v499
    %v540 = vunpack.c.l.b16 %v500
    %v541 = vunpack.c.l.b16 %v501
    %v542 = vunpack.c.l.b16 %v502
    %v543 = vunpack.c.l.b16 %v503
    %v544 = vunpack.c.l.b16 %v504
    %v545 = vunpack.c.l.b16 %v505
    %v546 = vunpack.c.l.b16 %v506
    %v547 = vunpack.c.l.b16 %v507
    %v548 = vunpack.c.l.b16 %v508
    %v549 = vunpack.c.l.b16 %v509
    %v550 = vunpack.c.l.b16 %v510
    %v551 = vunpack.c.l.b16 %v511
    %v552 = vunpack.c.l.b16 %v512
    %v553 = vunpack.c.l.b16 %v513
    %v554 = vunpack.c.l.b16 %v514
    %v555 = vpack.c.b16 %v540, %v539
    %v556 = vpack.c.b16 %v542, %v541
    %v557 = vpack.c.b16 %v544, %v543
    %v558 = vpack.c.b16 %v546, %v545
    %v559 = vpack.c.b16 %v548, %v547
    %v560 = vpack.c.b16 %v550, %v549
    %v561 = vpack.c.b16 %v552, %v551
    %v562 = vpack.c.b16 %v554, %v553
    %571 = vmatprep.subr.bf16.mxu0 0
    %572 = vmatpush1.bf16.msra.mxu0 %v555
    %573 = vmatprep.subr.bf16.mxu0 0
    %574 = vmatpush1.bf16.msra.mxu0 %v556
    %575 = vmatprep.subr.bf16.mxu0 0
    %576 = vmatpush1.bf16.msra.mxu0 %v557
    %577 = vmatprep.subr.bf16.mxu0 0
    %578 = vmatpush1.bf16.msra.mxu0 %v558
    %579 = vmatprep.subr.bf16.mxu0 0
    %580 = vmatpush1.bf16.msra.mxu0 %v559
    %581 = vmatprep.subr.bf16.mxu0 0
    %582 = vmatpush1.bf16.msra.mxu0 %v560
    %583 = vmatprep.subr.bf16.mxu0 0
    %584 = vmatpush1.bf16.msra.mxu0 %v561
    %585 = vmatprep.subr.bf16.mxu0 0
    %586 = vmatpush1.bf16.msra.mxu0 %v562
    %587 = vmatprep.subr.bf16.mxu0 0
    %588 = vmatpush1.bf16.msra.mxu0 0
    %589 = vmatprep.subr.bf16.mxu0 0
    %590 = vmatpush1.bf16.msra.mxu0 0
    %591 = vmatprep.subr.bf16.mxu0 0
    %592 = vmatpush1.bf16.msra.mxu0 0
    %593 = vmatprep.subr.bf16.mxu0 0
    %594 = vmatpush1.bf16.msra.mxu0 0
    %595 = vmatprep.subr.bf16.mxu0 0
    %596 = vmatpush1.bf16.msra.mxu0 0
    %597 = vmatprep.subr.bf16.mxu0 0
    %598 = vmatpush1.bf16.msra.mxu0 0
    %599 = vmatprep.subr.bf16.mxu0 0
    %600 = vmatpush1.bf16.msra.mxu0 0
    %601 = vmatprep.subr.bf16.mxu0 0
    %602 = vmatpush1.bf16.msra.mxu0 0
    %603 = vmatprep.mubr.bf16.mxu0 0
    %604 = vmatmul.mubr.bf16.gmra.mrb[0].mxu0 %v519
    %v605 = vpop.f32.mrb[0].mxu0
    %v606 = vadd.f32 0.0, %v605
    %v607 = vpop.f32.mrb[0].mxu0
    %v608 = vpop.f32.mrb[0].mxu0
    %v609 = vadd.f32 0.0, %v608
    %v610 = vpop.f32.mrb[0].mxu0
    %611 = vmatprep.mubr.bf16.mxu0 0
    %612 = vmatmul.mubr.bf16.gmra.mrb[0].mxu0 %v520
    %v613 = vpop.f32.mrb[0].mxu0
    %v614 = vadd.f32 0.0, %v613
    %v615 = vpop.f32.mrb[0].mxu0
    %v616 = vpop.f32.mrb[0].mxu0
    %v617 = vadd.f32 0.0, %v616
    %v618 = vpop.f32.mrb[0].mxu0
    %619 = vdwg.mxu0
    %v620 = vadd.f32 %v461, %v606
    %v621 = vadd.f32 %v464, %v609
    %v622 = vadd.f32 %v469, %v614
    %v623 = vadd.f32 %v472, %v617
    %v624 = vld [vmem:[%s2] sm:$0x1]
    %v626 = vlaneseq
    %v627 = vshrl.u32 %v626, 7
    %v628 = vsub.s32 0, %v627
    %v629 = vrot.slane %v624, %v628
    %v631 = vmul.f32 %v620, %v629
    %v632 = vmul.f32 %v621, %v629
    %v633 = vmul.f32 %v622, %v629
    %v634 = vmul.f32 %v623, %v629
    %v635 = vld [vmem:[%s3] sm:$0x1]
    %v637 = vlaneseq
    %v638 = vshrl.u32 %v637, 7
    %v639 = vsub.s32 0, %v638
    %v640 = vrot.slane %v635, %v639
    %v642 = vadd.f32 %v631, %v640
    %v643 = vadd.f32 %v632, %v640
    %v644 = vadd.f32 %v633, %v640
    %v645 = vadd.f32 %v634, %v640
    %v646 = vmax.f32 %v642, 0.0
    %v647 = vmax.f32 %v643, 0.0
    %v648 = vmax.f32 %v644, 0.0
    %v649 = vmax.f32 %v645, 0.0
    %v650 = vld [vmem:[#allocation3] sm:$0x1]
    %v651 = vsel %vm94, 0, %v650
    %652 = vst [vmem:[#allocation3] sm:$0x1] %v651
    %v653 = vld [vmem:[#allocation3 + $0xc] sm:$0x1]
    %v654 = vsel %vm94, 0, %v653
    %655 = vst [vmem:[#allocation3 + $0xc] sm:$0x1] %v654
    %v656 = vld [vmem:[#allocation3 + $0x8] sm:$0x1]
    %v657 = vsel %vm102, 0, %v656
    %658 = vst [vmem:[#allocation3 + $0x8] sm:$0x1] %v657
    %v659 = vld [vmem:[#allocation3 + $0x14] sm:$0x1]
    %v660 = vsel %vm102, 0, %v659
    %661 = vst [vmem:[#allocation3 + $0x14] sm:$0x1] %v660
    %v662 = vpack.c.bf16 %v647, %v646
    %v663 = vpack.c.bf16 %v649, %v648
    %v666 = vunpack.c.l.b16 %v662
    %v667 = vunpack.c.h.b16 %v662
    %v668 = vunpack.c.l.b16 %v663
    %v669 = vunpack.c.h.b16 %v663
    %v670 = vpack.c.b16 %v666, %v666
    %v671 = vpack.c.b16 %v667, %v667
    %v672 = vpack.c.b16 %v668, %v668
    %v673 = vpack.c.b16 %v669, %v669
    %v675 = vshrl.u32 %v670, 16
    %v677 = vrot.slane %v675, 7
    %v678 = vshll.u32 %v670, 16
    %v680 = vor.u32 %v677, %v678
    %v681 = vrot.slane %v677, 4
    %v683 = vshrl.u32 %v671, 16
    %v685 = vrot.slane %v683, 7
    %v686 = vshll.u32 %v671, 16
    %v688 = vor.u32 %v685, %v686
    %v689 = vsel %vm114, %v681, %v688
    %v690 = vrot.slane %v685, 4
    %v692 = vshrl.u32 %v672, 16
    %v694 = vrot.slane %v692, 7
    %v695 = vshll.u32 %v672, 16
    %v697 = vor.u32 %v694, %v695
    %v698 = vrot.slane %v694, 4
    %v700 = vshrl.u32 %v673, 16
    %v702 = vrot.slane %v700, 7
    %v703 = vshll.u32 %v673, 16
    %v705 = vor.u32 %v702, %v703
    %v706 = vsel %vm114, %v698, %v705
    %v707 = vrot.slane %v702, 4
    %v714 = vld [vmem:[#allocation3] sm:$0xf]
    %v715 = vsel %vm156, %v680, %v714
    %716 = vst [vmem:[#allocation3] sm:$0xf] %v715
    %717 = vst [vmem:[#allocation3 + $0x4] sm:$0xf] %v689
    %v718 = vld [vmem:[#allocation3 + $0x8] sm:$0x1]
    %v719 = vsel %vm94, %v690, %v718
    %720 = vst [vmem:[#allocation3 + $0x8] sm:$0x1] %v719
    %v721 = vld [vmem:[#allocation3 + $0xc] sm:$0xf]
    %v722 = vsel %vm156, %v697, %v721
    %723 = vst [vmem:[#allocation3 + $0xc] sm:$0xf] %v722
    %724 = vst [vmem:[#allocation3 + $0x10] sm:$0xf] %v706
    %v725 = vld [vmem:[#allocation3 + $0x14] sm:$0x1]
    %v726 = vsel %vm94, %v707, %v725
    %727 = vst [vmem:[#allocation3 + $0x14] sm:$0x1] %v726
    %v728 = vld [vmem:[#allocation3] sm:$0xf]
    %v729 = vld [vmem:[#allocation3 + $0x4] sm:$0xf]
    %v730 = vld [vmem:[#allocation3 + $0xc] sm:$0xf]
    %v731 = vld [vmem:[#allocation3 + $0x10] sm:$0xf]
    %v732 = vld [vmem:[#allocation9] sm:$0xf]
    %v733 = vld [vmem:[#allocation9 + $0x4] sm:$0xf]
    %v734 = vld [vmem:[#allocation9 + $0x8] sm:$0xf]
    %v735 = vld [vmem:[#allocation9 + $0xc] sm:$0xf]
    %v736 = vld [vmem:[#allocation9 + $0x10] sm:$0xf]
    %v737 = vld [vmem:[#allocation9 + $0x14] sm:$0xf]
    %v738 = vld [vmem:[#allocation9 + $0x18] sm:$0xf]
    %v739 = vld [vmem:[#allocation9 + $0x1c] sm:$0xf]
    %v740 = vld [vmem:[#allocation9 + $0x20] sm:$0xf]
    %v741 = vld [vmem:[#allocation9 + $0x24] sm:$0xf]
    %v742 = vld [vmem:[#allocation9 + $0x28] sm:$0xf]
    %v743 = vld [vmem:[#allocation9 + $0x2c] sm:$0xf]
    %v744 = vld [vmem:[#allocation9 + $0x30] sm:$0xf]
    %v745 = vld [vmem:[#allocation9 + $0x34] sm:$0xf]
    %v746 = vld [vmem:[#allocation9 + $0x38] sm:$0xf]
    %v747 = vld [vmem:[#allocation9 + $0x3c] sm:$0xf]
    %v748 = vld [vmem:[#allocation3 + $0x8] sm:$0x1]
    %v749 = vld [vmem:[#allocation3 + $0x14] sm:$0x1]
    %v751 = vshrl.u32 %v728, 16
    %v753 = vrot.slane %v751, 4
    %v754 = vshll.u32 %v728, 16
    %v756 = vrot.slane %v754, 5
    %v757 = vor.u32 %v753, %v756
    %v758 = vrot.slane %v757, 4
    %v760 = vshll.u32 %v729, 16
    %v762 = vrot.slane %v760, 5
    %v763 = vsel %vm195, %v758, %v762
    %v764 = vshrl.u32 %v729, 16
    %v766 = vrot.slane %v764, 4
    %v767 = vor.u32 %v766, %v762
    %v768 = vrot.slane %v767, 4
    %v770 = vshll.u32 %v748, 16
    %v772 = vrot.slane %v770, 5
    %v773 = vsel %vm195, %v768, %v772
    %v775 = vshrl.u32 %v730, 16
    %v777 = vrot.slane %v775, 4
    %v778 = vshll.u32 %v730, 16
    %v780 = vrot.slane %v778, 5
    %v781 = vor.u32 %v777, %v780
    %v782 = vrot.slane %v781, 4
    %v784 = vshll.u32 %v731, 16
    %v786 = vrot.slane %v784, 5
    %v787 = vsel %vm195, %v782, %v786
    %v788 = vshrl.u32 %v731, 16
    %v790 = vrot.slane %v788, 4
    %v791 = vor.u32 %v790, %v786
    %v792 = vrot.slane %v791, 4
    %v794 = vshll.u32 %v749, 16
    %v796 = vrot.slane %v794, 5
    %v797 = vsel %vm195, %v792, %v796
    %s798 = scalar_lea.vmem [#allocation9], 64
    %v799 = vld [vmem:[%s798] sm:$0xf]
    %v800 = vld [vmem:[%s798 + $0x4] sm:$0xf]
    %v801 = vld [vmem:[%s798 + $0x8] sm:$0xf]
    %v802 = vld [vmem:[%s798 + $0xc] sm:$0xf]
    %v803 = vld [vmem:[%s798 + $0x10] sm:$0xf]
    %v804 = vld [vmem:[%s798 + $0x14] sm:$0xf]
    %v805 = vld [vmem:[%s798 + $0x18] sm:$0xf]
    %v806 = vld [vmem:[%s798 + $0x1c] sm:$0xf]
    %v807 = vld [vmem:[%s798 + $0x20] sm:$0xf]
    %v808 = vld [vmem:[%s798 + $0x24] sm:$0xf]
    %v809 = vld [vmem:[%s798 + $0x28] sm:$0xf]
    %v810 = vld [vmem:[%s798 + $0x2c] sm:$0xf]
    %v811 = vld [vmem:[%s798 + $0x30] sm:$0xf]
    %v812 = vld [vmem:[%s798 + $0x34] sm:$0xf]
    %v813 = vld [vmem:[%s798 + $0x38] sm:$0xf]
    %v814 = vld [vmem:[%s798 + $0x3c] sm:$0xf]
    %v815 = vunpack.c.l.b16 %v763
    %v816 = vunpack.c.l.b16 %v773
    %v817 = vunpack.c.l.b16 %v787
    %v818 = vunpack.c.l.b16 %v797
    %v819 = vpack.c.b16 %v816, %v815
    %v820 = vpack.c.b16 %v818, %v817
    %v839 = vunpack.c.l.b16 %v799
    %v840 = vunpack.c.l.b16 %v800
    %v841 = vunpack.c.l.b16 %v801
    %v842 = vunpack.c.l.b16 %v802
    %v843 = vunpack.c.l.b16 %v803
    %v844 = vunpack.c.l.b16 %v804
    %v845 = vunpack.c.l.b16 %v805
    %v846 = vunpack.c.l.b16 %v806
    %v847 = vunpack.c.l.b16 %v807
    %v848 = vunpack.c.l.b16 %v808
    %v849 = vunpack.c.l.b16 %v809
    %v850 = vunpack.c.l.b16 %v810
    %v851 = vunpack.c.l.b16 %v811
    %v852 = vunpack.c.l.b16 %v812
    %v853 = vunpack.c.l.b16 %v813
    %v854 = vunpack.c.l.b16 %v814
    %v855 = vpack.c.b16 %v840, %v839
    %v856 = vpack.c.b16 %v842, %v841
    %v857 = vpack.c.b16 %v844, %v843
    %v858 = vpack.c.b16 %v846, %v845
    %v859 = vpack.c.b16 %v848, %v847
    %v860 = vpack.c.b16 %v850, %v849
    %v861 = vpack.c.b16 %v852, %v851
    %v862 = vpack.c.b16 %v854, %v853
    %871 = vmatprep.subr.bf16.mxu0 0
    %872 = vmatpush1.bf16.msra.mxu0 %v855
    %873 = vmatprep.subr.bf16.mxu0 0
    %874 = vmatpush1.bf16.msra.mxu0 %v856
    %875 = vmatprep.subr.bf16.mxu0 0
    %876 = vmatpush1.bf16.msra.mxu0 %v857
    %877 = vmatprep.subr.bf16.mxu0 0
    %878 = vmatpush1.bf16.msra.mxu0 %v858
    %879 = vmatprep.subr.bf16.mxu0 0
    %880 = vmatpush1.bf16.msra.mxu0 %v859
    %881 = vmatprep.subr.bf16.mxu0 0
    %882 = vmatpush1.bf16.msra.mxu0 %v860
    %883 = vmatprep.subr.bf16.mxu0 0
    %884 = vmatpush1.bf16.msra.mxu0 %v861
    %885 = vmatprep.subr.bf16.mxu0 0
    %886 = vmatpush1.bf16.msra.mxu0 %v862
    %887 = vmatprep.subr.bf16.mxu0 0
    %888 = vmatpush1.bf16.msra.mxu0 0
    %889 = vmatprep.subr.bf16.mxu0 0
    %890 = vmatpush1.bf16.msra.mxu0 0
    %891 = vmatprep.subr.bf16.mxu0 0
    %892 = vmatpush1.bf16.msra.mxu0 0
    %893 = vmatprep.subr.bf16.mxu0 0
    %894 = vmatpush1.bf16.msra.mxu0 0
    %895 = vmatprep.subr.bf16.mxu0 0
    %896 = vmatpush1.bf16.msra.mxu0 0
    %897 = vmatprep.subr.bf16.mxu0 0
    %898 = vmatpush1.bf16.msra.mxu0 0
    %899 = vmatprep.subr.bf16.mxu0 0
    %900 = vmatpush1.bf16.msra.mxu0 0
    %901 = vmatprep.subr.bf16.mxu0 0
    %902 = vmatpush1.bf16.msra.mxu0 0
    %903 = vmatprep.mubr.bf16.mxu0 0
    %904 = vmatmul.mubr.bf16.gmra.mrb[0].mxu0 %v819
    %v905 = vpop.f32.mrb[0].mxu0
    %v906 = vadd.f32 0.0, %v905
    %v907 = vpop.f32.mrb[0].mxu0
    %v908 = vpop.f32.mrb[0].mxu0
    %v909 = vadd.f32 0.0, %v908
    %v910 = vpop.f32.mrb[0].mxu0
    %911 = vmatprep.mubr.bf16.mxu0 0
    %912 = vmatmul.mubr.bf16.gmra.mrb[0].mxu0 %v820
    %v913 = vpop.f32.mrb[0].mxu0
    %v914 = vadd.f32 0.0, %v913
    %v915 = vpop.f32.mrb[0].mxu0
    %v916 = vpop.f32.mrb[0].mxu0
    %v917 = vadd.f32 0.0, %v916
    %v918 = vpop.f32.mrb[0].mxu0
    %919 = vdwg.mxu0
    %v924 = vunpack.c.l.b16 %v728
    %v925 = vunpack.c.l.b16 %v729
    %v926 = vunpack.c.l.b16 %v730
    %v927 = vunpack.c.l.b16 %v731
    %v928 = vpack.c.b16 %v925, %v924
    %v929 = vpack.c.b16 %v927, %v926
    %v948 = vunpack.c.l.b16 %v732
    %v949 = vunpack.c.l.b16 %v733
    %v950 = vunpack.c.l.b16 %v734
    %v951 = vunpack.c.l.b16 %v735
    %v952 = vunpack.c.l.b16 %v736
    %v953 = vunpack.c.l.b16 %v737
    %v954 = vunpack.c.l.b16 %v738
    %v955 = vunpack.c.l.b16 %v739
    %v956 = vunpack.c.l.b16 %v740
    %v957 = vunpack.c.l.b16 %v741
    %v958 = vunpack.c.l.b16 %v742
    %v959 = vunpack.c.l.b16 %v743
    %v960 = vunpack.c.l.b16 %v744
    %v961 = vunpack.c.l.b16 %v745
    %v962 = vunpack.c.l.b16 %v746
    %v963 = vunpack.c.l.b16 %v747
    %v964 = vpack.c.b16 %v949, %v948
    %v965 = vpack.c.b16 %v951, %v950
    %v966 = vpack.c.b16 %v953, %v952
    %v967 = vpack.c.b16 %v955, %v954
    %v968 = vpack.c.b16 %v957, %v956
    %v969 = vpack.c.b16 %v959, %v958
    %v970 = vpack.c.b16 %v961, %v960
    %v971 = vpack.c.b16 %v963, %v962
    %980 = vmatprep.subr.bf16.mxu0 0
    %981 = vmatpush1.bf16.msra.mxu0 %v964
    %982 = vmatprep.subr.bf16.mxu0 0
    %983 = vmatpush1.bf16.msra.mxu0 %v965
    %984 = vmatprep.subr.bf16.mxu0 0
    %985 = vmatpush1.bf16.msra.mxu0 %v966
    %986 = vmatprep.subr.bf16.mxu0 0
    %987 = vmatpush1.bf16.msra.mxu0 %v967
    %988 = vmatprep.subr.bf16.mxu0 0
    %989 = vmatpush1.bf16.msra.mxu0 %v968
    %990 = vmatprep.subr.bf16.mxu0 0
    %991 = vmatpush1.bf16.msra.mxu0 %v969
    %992 = vmatprep.subr.bf16.mxu0 0
    %993 = vmatpush1.bf16.msra.mxu0 %v970
    %994 = vmatprep.subr.bf16.mxu0 0
    %995 = vmatpush1.bf16.msra.mxu0 %v971
    %996 = vmatprep.subr.bf16.mxu0 0
    %997 = vmatpush1.bf16.msra.mxu0 0
    %998 = vmatprep.subr.bf16.mxu0 0
    %999 = vmatpush1.bf16.msra.mxu0 0
    %1000 = vmatprep.subr.bf16.mxu0 0
    %1001 = vmatpush1.bf16.msra.mxu0 0
    %1002 = vmatprep.subr.bf16.mxu0 0
    %1003 = vmatpush1.bf16.msra.mxu0 0
    %1004 = vmatprep.subr.bf16.mxu0 0
    %1005 = vmatpush1.bf16.msra.mxu0 0
    %1006 = vmatprep.subr.bf16.mxu0 0
    %1007 = vmatpush1.bf16.msra.mxu0 0
    %1008 = vmatprep.subr.bf16.mxu0 0
    %1009 = vmatpush1.bf16.msra.mxu0 0
    %1010 = vmatprep.subr.bf16.mxu0 0
    %1011 = vmatpush1.bf16.msra.mxu0 0
    %1012 = vmatprep.mubr.bf16.mxu0 0
    %1013 = vmatmul.mubr.bf16.gmra.mrb[0].mxu0 %v928
    %v1014 = vpop.f32.mrb[0].mxu0
    %v1015 = vadd.f32 %v906, %v1014
    %v1016 = vpop.f32.mrb[0].mxu0
    %v1017 = vpop.f32.mrb[0].mxu0
    %v1018 = vadd.f32 %v909, %v1017
    %v1019 = vpop.f32.mrb[0].mxu0
    %1020 = vmatprep.mubr.bf16.mxu0 0
    %1021 = vmatmul.mubr.bf16.gmra.mrb[0].mxu0 %v929
    %v1022 = vpop.f32.mrb[0].mxu0
    %v1023 = vadd.f32 %v914, %v1022
    %v1024 = vpop.f32.mrb[0].mxu0
    %v1025 = vpop.f32.mrb[0].mxu0
    %v1026 = vadd.f32 %v917, %v1025
    %v1027 = vpop.f32.mrb[0].mxu0
    %1028 = vdwg.mxu0
    %v1029 = vld [vmem:[#allocation3] sm:$0xe]
    %v1030 = vld [vmem:[#allocation3 + $0xc] sm:$0xe]
    %v1035 = vrot.slane %v1029, 5
    %v1036 = vrot.slane %v1035, 4
    %v1037 = vrot.slane %v729, 5
    %v1038 = vsel %vm483, %v1036, %v1037
    %v1039 = vrot.slane %v1037, 4
    %v1040 = vrot.slane %v748, 5
    %v1041 = vsel %vm483, %v1039, %v1040
    %v1042 = vrot.slane %v1030, 5
    %v1043 = vrot.slane %v1042, 4
    %v1044 = vrot.slane %v731, 5
    %v1045 = vsel %vm483, %v1043, %v1044
    %v1046 = vrot.slane %v1044, 4
    %v1047 = vrot.slane %v749, 5
    %v1048 = vsel %vm483, %v1046, %v1047
    %s1049 = scalar_lea.vmem [#allocation9], 128
    %v1050 = vld [vmem:[%s1049] sm:$0xf]
    %v1051 = vld [vmem:[%s1049 + $0x4] sm:$0xf]
    %v1052 = vld [vmem:[%s1049 + $0x8] sm:$0xf]
    %v1053 = vld [vmem:[%s1049 + $0xc] sm:$0xf]
    %v1054 = vld [vmem:[%s1049 + $0x10] sm:$0xf]
    %v1055 = vld [vmem:[%s1049 + $0x14] sm:$0xf]
    %v1056 = vld [vmem:[%s1049 + $0x18] sm:$0xf]
    %v1057 = vld [vmem:[%s1049 + $0x1c] sm:$0xf]
    %v1058 = vld [vmem:[%s1049 + $0x20] sm:$0xf]
    %v1059 = vld [vmem:[%s1049 + $0x24] sm:$0xf]
    %v1060 = vld [vmem:[%s1049 + $0x28] sm:$0xf]
    %v1061 = vld [vmem:[%s1049 + $0x2c] sm:$0xf]
    %v1062 = vld [vmem:[%s1049 + $0x30] sm:$0xf]
    %v1063 = vld [vmem:[%s1049 + $0x34] sm:$0xf]
    %v1064 = vld [vmem:[%s1049 + $0x38] sm:$0xf]
    %v1065 = vld [vmem:[%s1049 + $0x3c] sm:$0xf]
    %v1066 = vunpack.c.l.b16 %v1038
    %v1067 = vunpack.c.l.b16 %v1041
    %v1068 = vunpack.c.l.b16 %v1045
    %v1069 = vunpack.c.l.b16 %v1048
    %v1070 = vpack.c.b16 %v1067, %v1066
    %v1071 = vpack.c.b16 %v1069, %v1068
    %v1090 = vunpack.c.l.b16 %v1050
    %v1091 = vunpack.c.l.b16 %v1051
    %v1092 = vunpack.c.l.b16 %v1052
    %v1093 = vunpack.c.l.b16 %v1053
    %v1094 = vunpack.c.l.b16 %v1054
    %v1095 = vunpack.c.l.b16 %v1055
    %v1096 = vunpack.c.l.b16 %v1056
    %v1097 = vunpack.c.l.b16 %v1057
    %v1098 = vunpack.c.l.b16 %v1058
    %v1099 = vunpack.c.l.b16 %v1059
    %v1100 = vunpack.c.l.b16 %v1060
    %v1101 = vunpack.c.l.b16 %v1061
    %v1102 = vunpack.c.l.b16 %v1062
    %v1103 = vunpack.c.l.b16 %v1063
    %v1104 = vunpack.c.l.b16 %v1064
    %v1105 = vunpack.c.l.b16 %v1065
    %v1106 = vpack.c.b16 %v1091, %v1090
    %v1107 = vpack.c.b16 %v1093, %v1092
    %v1108 = vpack.c.b16 %v1095, %v1094
    %v1109 = vpack.c.b16 %v1097, %v1096
    %v1110 = vpack.c.b16 %v1099, %v1098
    %v1111 = vpack.c.b16 %v1101, %v1100
    %v1112 = vpack.c.b16 %v1103, %v1102
    %v1113 = vpack.c.b16 %v1105, %v1104
    %1122 = vmatprep.subr.bf16.mxu0 0
    %1123 = vmatpush1.bf16.msra.mxu0 %v1106
    %1124 = vmatprep.subr.bf16.mxu0 0
    %1125 = vmatpush1.bf16.msra.mxu0 %v1107
    %1126 = vmatprep.subr.bf16.mxu0 0
    %1127 = vmatpush1.bf16.msra.mxu0 %v1108
    %1128 = vmatprep.subr.bf16.mxu0 0
    %1129 = vmatpush1.bf16.msra.mxu0 %v1109
    %1130 = vmatprep.subr.bf16.mxu0 0
    %1131 = vmatpush1.bf16.msra.mxu0 %v1110
    %1132 = vmatprep.subr.bf16.mxu0 0
    %1133 = vmatpush1.bf16.msra.mxu0 %v1111
    %1134 = vmatprep.subr.bf16.mxu0 0
    %1135 = vmatpush1.bf16.msra.mxu0 %v1112
    %1136 = vmatprep.subr.bf16.mxu0 0
    %1137 = vmatpush1.bf16.msra.mxu0 %v1113
    %1138 = vmatprep.subr.bf16.mxu0 0
    %1139 = vmatpush1.bf16.msra.mxu0 0
    %1140 = vmatprep.subr.bf16.mxu0 0
    %1141 = vmatpush1.bf16.msra.mxu0 0
    %1142 = vmatprep.subr.bf16.mxu0 0
    %1143 = vmatpush1.bf16.msra.mxu0 0
    %1144 = vmatprep.subr.bf16.mxu0 0
    %1145 = vmatpush1.bf16.msra.mxu0 0
    %1146 = vmatprep.subr.bf16.mxu0 0
    %1147 = vmatpush1.bf16.msra.mxu0 0
    %1148 = vmatprep.subr.bf16.mxu0 0
    %1149 = vmatpush1.bf16.msra.mxu0 0
    %1150 = vmatprep.subr.bf16.mxu0 0
    %1151 = vmatpush1.bf16.msra.mxu0 0
    %1152 = vmatprep.subr.bf16.mxu0 0
    %1153 = vmatpush1.bf16.msra.mxu0 0
    %1154 = vmatprep.mubr.bf16.mxu0 0
    %1155 = vmatmul.mubr.bf16.gmra.mrb[0].mxu0 %v1070
    %v1156 = vpop.f32.mrb[0].mxu0
    %v1157 = vadd.f32 0.0, %v1156
    %v1158 = vpop.f32.mrb[0].mxu0
    %v1159 = vpop.f32.mrb[0].mxu0
    %v1160 = vadd.f32 0.0, %v1159
    %v1161 = vpop.f32.mrb[0].mxu0
    %1162 = vmatprep.mubr.bf16.mxu0 0
    %1163 = vmatmul.mubr.bf16.gmra.mrb[0].mxu0 %v1071
    %v1164 = vpop.f32.mrb[0].mxu0
    %v1165 = vadd.f32 0.0, %v1164
    %v1166 = vpop.f32.mrb[0].mxu0
    %v1167 = vpop.f32.mrb[0].mxu0
    %v1168 = vadd.f32 0.0, %v1167
    %v1169 = vpop.f32.mrb[0].mxu0
    %1170 = vdwg.mxu0
    %v1171 = vadd.f32 %v1015, %v1157
    %v1172 = vadd.f32 %v1018, %v1160
    %v1173 = vadd.f32 %v1023, %v1165
    %v1174 = vadd.f32 %v1026, %v1168
    %v1175 = vld [vmem:[%s5] sm:$0x1]
    %v1177 = vlaneseq
    %v1178 = vshrl.u32 %v1177, 7
    %v1179 = vsub.s32 0, %v1178
    %v1180 = vrot.slane %v1175, %v1179
    %v1182 = vmul.f32 %v1171, %v1180
    %v1183 = vmul.f32 %v1172, %v1180
    %v1184 = vmul.f32 %v1173, %v1180
    %v1185 = vmul.f32 %v1174, %v1180
    %v1186 = vld [vmem:[%s6] sm:$0x1]
    %v1188 = vlaneseq
    %v1189 = vshrl.u32 %v1188, 7
    %v1190 = vsub.s32 0, %v1189
    %v1191 = vrot.slane %v1186, %v1190
    %v1193 = vadd.f32 %v1182, %v1191
    %v1194 = vadd.f32 %v1183, %v1191
    %v1195 = vadd.f32 %v1184, %v1191
    %v1196 = vadd.f32 %v1185, %v1191
    %v1197 = vld [vmem:[#allocation4] sm:$0xf]
    %v1198 = vld [vmem:[#allocation4 + $0x4] sm:$0xf]
    %v1199 = vld [vmem:[#allocation4 + $0x8] sm:$0xf]
    %v1200 = vld [vmem:[#allocation4 + $0xc] sm:$0xf]
    %v1201 = vld [vmem:[#allocation10] sm:$0xf]
    %v1202 = vld [vmem:[#allocation10 + $0x4] sm:$0xf]
    %v1203 = vld [vmem:[#allocation10 + $0x8] sm:$0xf]
    %v1204 = vld [vmem:[#allocation10 + $0xc] sm:$0xf]
    %v1205 = vld [vmem:[#allocation10 + $0x10] sm:$0xf]
    %v1206 = vld [vmem:[#allocation10 + $0x14] sm:$0xf]
    %v1207 = vld [vmem:[#allocation10 + $0x18] sm:$0xf]
    %v1208 = vld [vmem:[#allocation10 + $0x1c] sm:$0xf]
    %v1209 = vld [vmem:[#allocation10 + $0x20] sm:$0xf]
    %v1210 = vld [vmem:[#allocation10 + $0x24] sm:$0xf]
    %v1211 = vld [vmem:[#allocation10 + $0x28] sm:$0xf]
    %v1212 = vld [vmem:[#allocation10 + $0x2c] sm:$0xf]
    %v1213 = vld [vmem:[#allocation10 + $0x30] sm:$0xf]
    %v1214 = vld [vmem:[#allocation10 + $0x34] sm:$0xf]
    %v1215 = vld [vmem:[#allocation10 + $0x38] sm:$0xf]
    %v1216 = vld [vmem:[#allocation10 + $0x3c] sm:$0xf]
    %v1221 = vunpack.c.l.b16 %v1197
    %v1222 = vunpack.c.l.b16 %v1198
    %v1223 = vunpack.c.l.b16 %v1199
    %v1224 = vunpack.c.l.b16 %v1200
    %v1225 = vpack.c.b16 %v1222, %v1221
    %v1226 = vpack.c.b16 %v1224, %v1223
    %v1245 = vunpack.c.l.b16 %v1201
    %v1246 = vunpack.c.l.b16 %v1202
    %v1247 = vunpack.c.l.b16 %v1203
    %v1248 = vunpack.c.l.b16 %v1204
    %v1249 = vunpack.c.l.b16 %v1205
    %v1250 = vunpack.c.l.b16 %v1206
    %v1251 = vunpack.c.l.b16 %v1207
    %v1252 = vunpack.c.l.b16 %v1208
    %v1253 = vunpack.c.l.b16 %v1209
    %v1254 = vunpack.c.l.b16 %v1210
    %v1255 = vunpack.c.l.b16 %v1211
    %v1256 = vunpack.c.l.b16 %v1212
    %v1257 = vunpack.c.l.b16 %v1213
    %v1258 = vunpack.c.l.b16 %v1214
    %v1259 = vunpack.c.l.b16 %v1215
    %v1260 = vunpack.c.l.b16 %v1216
    %v1261 = vpack.c.b16 %v1246, %v1245
    %v1262 = vpack.c.b16 %v1248, %v1247
    %v1263 = vpack.c.b16 %v1250, %v1249
    %v1264 = vpack.c.b16 %v1252, %v1251
    %v1265 = vpack.c.b16 %v1254, %v1253
    %v1266 = vpack.c.b16 %v1256, %v1255
    %v1267 = vpack.c.b16 %v1258, %v1257
    %v1268 = vpack.c.b16 %v1260, %v1259
    %1277 = vmatprep.subr.bf16.mxu0 0
    %1278 = vmatpush1.bf16.msra.mxu0 %v1261
    %1279 = vmatprep.subr.bf16.mxu0 0
    %1280 = vmatpush1.bf16.msra.mxu0 %v1262
    %1281 = vmatprep.subr.bf16.mxu0 0
    %1282 = vmatpush1.bf16.msra.mxu0 %v1263
    %1283 = vmatprep.subr.bf16.mxu0 0
    %1284 = vmatpush1.bf16.msra.mxu0 %v1264
    %1285 = vmatprep.subr.bf16.mxu0 0
    %1286 = vmatpush1.bf16.msra.mxu0 %v1265
    %1287 = vmatprep.subr.bf16.mxu0 0
    %1288 = vmatpush1.bf16.msra.mxu0 %v1266
    %1289 = vmatprep.subr.bf16.mxu0 0
    %1290 = vmatpush1.bf16.msra.mxu0 %v1267
    %1291 = vmatprep.subr.bf16.mxu0 0
    %1292 = vmatpush1.bf16.msra.mxu0 %v1268
    %1293 = vmatprep.subr.bf16.mxu0 0
    %1294 = vmatpush1.bf16.msra.mxu0 0
    %1295 = vmatprep.subr.bf16.mxu0 0
    %1296 = vmatpush1.bf16.msra.mxu0 0
    %1297 = vmatprep.subr.bf16.mxu0 0
    %1298 = vmatpush1.bf16.msra.mxu0 0
    %1299 = vmatprep.subr.bf16.mxu0 0
    %1300 = vmatpush1.bf16.msra.mxu0 0
    %1301 = vmatprep.subr.bf16.mxu0 0
    %1302 = vmatpush1.bf16.msra.mxu0 0
    %1303 = vmatprep.subr.bf16.mxu0 0
    %1304 = vmatpush1.bf16.msra.mxu0 0
    %1305 = vmatprep.subr.bf16.mxu0 0
    %1306 = vmatpush1.bf16.msra.mxu0 0
    %1307 = vmatprep.subr.bf16.mxu0 0
    %1308 = vmatpush1.bf16.msra.mxu0 0
    %1309 = vmatprep.mubr.bf16.mxu0 0
    %1310 = vmatmul.mubr.bf16.gmra.mrb[0].mxu0 %v1225
    %v1311 = vpop.f32.mrb[0].mxu0
    %v1312 = vadd.f32 0.0, %v1311
    %v1313 = vpop.f32.mrb[0].mxu0
    %v1314 = vpop.f32.mrb[0].mxu0
    %v1315 = vadd.f32 0.0, %v1314
    %v1316 = vpop.f32.mrb[0].mxu0
    %1317 = vmatprep.mubr.bf16.mxu0 0
    %1318 = vmatmul.mubr.bf16.gmra.mrb[0].mxu0 %v1226
    %v1319 = vpop.f32.mrb[0].mxu0
    %v1320 = vadd.f32 0.0, %v1319
    %v1321 = vpop.f32.mrb[0].mxu0
    %v1322 = vpop.f32.mrb[0].mxu0
    %v1323 = vadd.f32 0.0, %v1322
    %v1324 = vpop.f32.mrb[0].mxu0
    %1325 = vdwg.mxu0
    %v1326 = vld [vmem:[%s8] sm:$0x1]
    %v1328 = vlaneseq
    %v1329 = vshrl.u32 %v1328, 7
    %v1330 = vsub.s32 0, %v1329
    %v1331 = vrot.slane %v1326, %v1330
    %v1333 = vmul.f32 %v1312, %v1331
    %v1334 = vmul.f32 %v1315, %v1331
    %v1335 = vmul.f32 %v1320, %v1331
    %v1336 = vmul.f32 %v1323, %v1331
    %v1337 = vld [vmem:[%s9] sm:$0x1]
    %v1339 = vlaneseq
    %v1340 = vshrl.u32 %v1339, 7
    %v1341 = vsub.s32 0, %v1340
    %v1342 = vrot.slane %v1337, %v1341
    %v1344 = vadd.f32 %v1333, %v1342
    %v1345 = vadd.f32 %v1334, %v1342
    %v1346 = vadd.f32 %v1335, %v1342
    %v1347 = vadd.f32 %v1336, %v1342
    %v1348 = vadd.f32 %v1193, %v1344
    %v1349 = vadd.f32 %v1194, %v1345
    %v1350 = vadd.f32 %v1195, %v1346
    %v1351 = vadd.f32 %v1196, %v1347
    %v1352 = vmax.f32 %v1348, 0.0
    %v1353 = vmax.f32 %v1349, 0.0
    %v1354 = vmax.f32 %v1350, 0.0
    %v1355 = vmax.f32 %v1351, 0.0
    %v1356 = vpack.c.bf16 %v1353, %v1352
    %v1357 = vpack.c.bf16 %v1355, %v1354
    %v1360 = vunpack.c.l.b16 %v1356
    %v1361 = vunpack.c.h.b16 %v1356
    %v1362 = vunpack.c.l.b16 %v1357
    %v1363 = vunpack.c.h.b16 %v1357
    %v1364 = vpack.c.b16 %v1360, %v1360
    %v1365 = vpack.c.b16 %v1361, %v1361
    %v1366 = vpack.c.b16 %v1362, %v1362
    %v1367 = vpack.c.b16 %v1363, %v1363
    %1372 = vst [vmem:[#allocation12] sm:$0xf] %v1364
    %1373 = vst [vmem:[#allocation12 + $0x4] sm:$0xf] %v1365
    %1374 = vst [vmem:[#allocation12 + $0x8] sm:$0xf] %v1366
    %1375 = vst [vmem:[#allocation12 + $0xc] sm:$0xf] %v1367
    // Predicated region
    $region58: #{tpu_custom_call.1} parent=1 // pred_check
      _
    $region59: #{tpu_custom_call.1} parent=1 // pred_check_branch
      %1377 = sbr.rel (0) target = $region61
    $region60: #{tpu_custom_call.1} parent=1 // pred_region
      %s1379 = ssub.s32 256, 256
      %1380 = vsyncadd [#allocation6], %s1379
      %s1381 = sshll.u32 [#allocation12], 4
      %s1382 = int_to_ptr.vmem [resolvable:$true] %s1381
      %1387 = dma.vmem_to_hbm [thread:$0]  %s1382, 256, %s10, [#allocation6], 64, 64, 4
    $region61: #{tpu_custom_call.1} parent=1 // pred_fallthru
      _
    // Predicated region
    $region62: #{tpu_custom_call.1} parent=1 // pred_check
      _
    $region63: #{tpu_custom_call.1} parent=1 // pred_check_branch
      %1389 = sbr.rel (0) target = $region65
    $region64: #{tpu_custom_call.1} parent=1 // pred_region
      %1390 = dma.done [#allocation6], 256
    $region65: #{tpu_custom_call.1} parent=1 // pred_fallthru
      _
    %1391 = vsyncpa [#allocation5], 1
    %1392 = vsyncpa [#allocation8], 1
    %1393 = vsyncpa [#allocation11], 1
    %1394 = vsyncpa [#allocation6], 1

</llo_original>
